<compile_context>
chip_gen: v7x
topology: tpu7x:2x2x1
jax: 0.10.0
libtpu: 0.0.40
codegen_flags: <defaults>
</compile_context>

<pallas_src>
import jax
import jax.numpy as jnp
from jax.experimental import pallas as pl
from jax.experimental.pallas import tpu as pltpu

S_DIM = 38            # state features
A_DIM = 2             # action features
IN_DIM = S_DIM + A_DIM
H = 512               # hidden width


def _round_up(x, m):
    return ((x + m - 1) // m) * m


def _cdiv(a, b):
    return -(-a // b)


def _choose_tiling(B):
    """Pick (tile_b, num_tiles, b_pad) for the batch grid."""
    cap = 1024  # keeps per-step temporaries well inside v7x's 64 MiB VMEM
    # Ensure >=2 grid steps once there is enough work so dimension_semantics
    # ("parallel",) actually uses both TensorCores on v7x; harmless elsewhere.
    min_tiles = 2 if B > 512 else 1
    num_tiles = max(min_tiles, _cdiv(B, cap))
    tile_b = _round_up(_cdiv(B, num_tiles), 8)   # minimizes padding
    b_pad = tile_b * num_tiles
    return tile_b, num_tiles, b_pad


def qnet_kernel(x_ref,
                w1_ref, b1_ref,
                w2h_ref, w2a_ref, b2_ref,
                w3_ref, b3_ref,
                w4_ref, b4_ref,
                out_ref):
    x = x_ref[...]                       # (TILE_B, 40) f32
    s = x[:, :S_DIM]                     # (TILE_B, 38) — in-tile slice, no relayout
    a = x[:, S_DIM:IN_DIM]               # (TILE_B, 2)

    # ---- layer1 + ReLU : bf16 MXU, f32 accumulate ---------------------------
    h1 = jnp.dot(s.astype(jnp.bfloat16), w1_ref[...],
                 preferred_element_type=jnp.float32) + b1_ref[...]
    h1 = jnp.maximum(h1, 0.0)

    # ---- layer2 on cat([h1, a]) + ReLU ---------------------------------------
    # action part: K=2 "matmul" as two VPU broadcast-FMAs (f32, exact).
    a_part = (a[:, 0:1] * w2a_ref[0:1, :]
              + a[:, 1:2] * w2a_ref[1:2, :])
    h2 = (jnp.dot(h1.astype(jnp.bfloat16), w2h_ref[...],
                  preferred_element_type=jnp.float32)
          + a_part + b2_ref[...])
    h2 = jnp.maximum(h2, 0.0)

    # ---- layer3 + ReLU --------------------------------------------------------
    h3 = jnp.dot(h2.astype(jnp.bfloat16), w3_ref[...],
                 preferred_element_type=jnp.float32) + b3_ref[...]
    h3 = jnp.maximum(h3, 0.0)

    # ---- layer4 : VPU multiply + XLU lane-reduction (no MXU, f32 exact) ------
    q = jnp.sum(h3 * w4_ref[...], axis=-1, keepdims=True) + b4_ref[...]
    out_ref[...] = q.astype(out_ref.dtype)


def qnet_forward(s, a, params):
    """s: (B, 38) f32, a: (B, 2) f32 -> (B, 1) f32."""
    (w1, b1, w2h, w2a, b2, w3, b3, w4v, b4) = params
    B = s.shape[0]
    if B == 0:
        return jnp.zeros((0, 1), jnp.float32)

    tile_b, num_tiles, b_pad = _choose_tiling(B)

    # Single streamed input: cat([s, a], 1), batch-padded to the tile grid.
    x = jnp.concatenate([s, a], axis=1)                  # (B, 40)
    if b_pad != B:
        x = jnp.pad(x, ((0, b_pad - B), (0, 0)))
    grid = (num_tiles,)

    batch_map = lambda i: (i, 0)
    const_map = lambda i: (0, 0)

    in_specs = [
        pl.BlockSpec((tile_b, IN_DIM), batch_map),  # x    (tile_b, 40) f32
        pl.BlockSpec(w1.shape, const_map),          # w1   (38, 512)   bf16
        pl.BlockSpec(b1.shape, const_map),          # b1   (1, 512)    f32
        pl.BlockSpec(w2h.shape, const_map),         # w2h  (512, 512)  bf16
        pl.BlockSpec(w2a.shape, const_map),         # w2a  (2, 512)    f32
        pl.BlockSpec(b2.shape, const_map),          # b2   (1, 512)    f32
        pl.BlockSpec(w3.shape, const_map),          # w3   (512, 512)  bf16
        pl.BlockSpec(b3.shape, const_map),          # b3   (1, 512)    f32
        pl.BlockSpec(w4v.shape, const_map),         # w4v  (1, 512)    f32
        pl.BlockSpec(b4.shape, const_map),          # b4   (1, 1)      f32
    ]
    out_specs = pl.BlockSpec((tile_b, 1), batch_map)

    flops = 2 * b_pad * (S_DIM * H + H * H + A_DIM * H + H * H + H)
    param_bytes = sum(int(p.size) * p.dtype.itemsize for p in params)
    bytes_accessed = param_bytes + b_pad * IN_DIM * 4 + b_pad * 4
    cost = pl.CostEstimate(flops=flops, transcendentals=0,
                           bytes_accessed=bytes_accessed)

    out = pl.pallas_call(
        qnet_kernel,
        out_shape=jax.ShapeDtypeStruct((b_pad, 1), jnp.float32),
        grid=grid,
        in_specs=in_specs,
        out_specs=out_specs,
        compiler_params=pltpu.CompilerParams(
            dimension_semantics=("parallel",),       # megacore on v7x
            vmem_limit_bytes=48 * 1024 * 1024,       # ~16-20 MiB used at tile_b=1024
        ),
        cost_estimate=cost,
    )(x, w1, b1, w2h, w2a, b2, w3, b3, w4v, b4)

    return out if b_pad == B else out[:B]


def init_params(key):
    """PyTorch-style Linear init: U(-1/sqrt(fan_in), 1/sqrt(fan_in)).

    Returns kernel-ready params: MXU weights in bf16, the tiny action weight
    and the layer4 weight vector kept f32 (VPU path), biases f32.
    """
    def linear(key, fan_in, fan_out):
        kw, kb = jax.random.split(key)
        bound = 1.0 / jnp.sqrt(jnp.float32(fan_in))
        w = jax.random.uniform(kw, (fan_in, fan_out), jnp.float32, -bound, bound)
        b = jax.random.uniform(kb, (1, fan_out), jnp.float32, -bound, bound)
        return w, b

    k1, k2, k3, k4 = jax.random.split(key, 4)
    w1, b1 = linear(k1, S_DIM, H)
    w2, b2 = linear(k2, H + A_DIM, H)       # layer2: in = 512 + 2
    w3, b3 = linear(k3, H, H)
    w4, b4 = linear(k4, H, 1)

    # split layer2 weight into h1-part and a-part (exact concat equivalence)
    w2h, w2a = w2[:H], w2[H:]

    # layer4 weight as a (1, 512) f32 row vector for the VPU/XLU path
    w4v = w4.T                               # (1, 512)
    b4 = b4.reshape(1, 1)                    # (1, 1)

    return (w1.astype(jnp.bfloat16), b1,
            w2h.astype(jnp.bfloat16), w2a, b2,
            w3.astype(jnp.bfloat16), b3,
            w4v, b4)


def qnet_reference(s, a, params):
    """Pure-JAX f32 reference with the original (concat) formulation."""
    (w1, b1, w2h, w2a, b2, w3, b3, w4v, b4) = params
    w1 = w1.astype(jnp.float32)
    w2 = jnp.concatenate([w2h.astype(jnp.float32), w2a], axis=0)
    w3 = w3.astype(jnp.float32)
    w4 = w4v.T                               # (512, 1)

    h1 = jax.nn.relu(s @ w1 + b1)
    h1a = jnp.concatenate([h1, a], axis=1)
    h2 = jax.nn.relu(h1a @ w2 + b2)
    h3 = jax.nn.relu(h2 @ w3 + b3)
    return h3 @ w4 + b4


if __name__ == "__main__":
    key = jax.random.PRNGKey(0)
    kp, ks, ka = jax.random.split(key, 3)

    params = init_params(kp)

    B = 8
    s = jax.random.normal(ks, (B, S_DIM), jnp.float32)
    a = jax.random.normal(ka, (B, A_DIM), jnp.float32)

    q = qnet_forward(s, a, params)
    q = jax.block_until_ready(q)

    q_ref = qnet_reference(s, a, params)
    assert q.shape == (B, 1)
    # bf16 MXU inputs with f32 accumulation vs f32 reference -> loose tolerance.
    assert jnp.allclose(q, q_ref, atol=3e-2, rtol=3e-2), (
        f"max abs err {jnp.max(jnp.abs(q - q_ref))}")

    print("KERNEL_OK")
</pallas_src>

<mosaic_0001>
module attributes {stable_mosaic.version = 11 : i64} {
  func.func @qnet_kernel(%arg0: i32, %arg1: memref<8x40xf32, #tpu.memory_space<vmem>>, %arg2: memref<38x512xbf16, #tpu.memory_space<vmem>>, %arg3: memref<1x512xf32, #tpu.memory_space<vmem>>, %arg4: memref<512x512xbf16, #tpu.memory_space<vmem>>, %arg5: memref<2x512xf32, #tpu.memory_space<vmem>>, %arg6: memref<1x512xf32, #tpu.memory_space<vmem>>, %arg7: memref<512x512xbf16, #tpu.memory_space<vmem>>, %arg8: memref<1x512xf32, #tpu.memory_space<vmem>>, %arg9: memref<1x512xf32, #tpu.memory_space<vmem>>, %arg10: memref<1x1xf32, #tpu.memory_space<vmem>>, %arg11: memref<8x1xf32, #tpu.memory_space<vmem>>) attributes {dimension_semantics = [#tpu.dimension_semantics<parallel>], iteration_bounds = array<i64: 1>, scalar_prefetch = 0 : i64, scratch_operands = 0 : i64, tpu.core_type = #tpu.core_type<tc>, window_params = [{transform_indices = @transform_0, window_bounds = array<i64: 8, 40>}, {pipeline_mode = #tpu.pipeline_mode<synchronous>, transform_indices = @transform_1, window_bounds = array<i64: 38, 512>}, {pipeline_mode = #tpu.pipeline_mode<synchronous>, transform_indices = @transform_2, window_bounds = array<i64: 1, 512>}, {pipeline_mode = #tpu.pipeline_mode<synchronous>, transform_indices = @transform_3, window_bounds = array<i64: 512, 512>}, {pipeline_mode = #tpu.pipeline_mode<synchronous>, transform_indices = @transform_4, window_bounds = array<i64: 2, 512>}, {pipeline_mode = #tpu.pipeline_mode<synchronous>, transform_indices = @transform_5, window_bounds = array<i64: 1, 512>}, {pipeline_mode = #tpu.pipeline_mode<synchronous>, transform_indices = @transform_6, window_bounds = array<i64: 512, 512>}, {pipeline_mode = #tpu.pipeline_mode<synchronous>, transform_indices = @transform_7, window_bounds = array<i64: 1, 512>}, {pipeline_mode = #tpu.pipeline_mode<synchronous>, transform_indices = @transform_8, window_bounds = array<i64: 1, 512>}, {pipeline_mode = #tpu.pipeline_mode<synchronous>, transform_indices = @transform_9, window_bounds = array<i64: 1, 1>}, {transform_indices = @transform_10, window_bounds = array<i64: 8, 1>}]} {
    %c0 = arith.constant 0 : index
    %c0_0 = arith.constant 0 : index
    %0 = vector.load %arg1[%c0, %c0_0] : memref<8x40xf32, #tpu.memory_space<vmem>>, vector<8x40xf32>
    %1 = vector.extract_strided_slice %0 {offsets = [0, 0], sizes = [8, 38], strides = [1, 1]} : vector<8x40xf32> to vector<8x38xf32>
    %2 = vector.extract_strided_slice %0 {offsets = [0, 38], sizes = [8, 2], strides = [1, 1]} : vector<8x40xf32> to vector<8x2xf32>
    %3 = arith.truncf %1 : vector<8x38xf32> to vector<8x38xbf16>
    %c0_1 = arith.constant 0 : index
    %c0_2 = arith.constant 0 : index
    %4 = vector.load %arg2[%c0_1, %c0_2] : memref<38x512xbf16, #tpu.memory_space<vmem>>, vector<38x512xbf16>
    %cst = arith.constant dense<0.000000e+00> : vector<8x512xf32>
    %5 = tpu.matmul %3, %4, %cst {dimension_numbers = #tpu.dot_dimension_numbers<[1], [0], [0], [1], [0, 0, 1, 1], [], []>} : vector<8x38xbf16>, vector<38x512xbf16>, vector<8x512xf32> -> vector<8x512xf32>
    %c0_3 = arith.constant 0 : index
    %c0_4 = arith.constant 0 : index
    %6 = vector.load %arg3[%c0_3, %c0_4] : memref<1x512xf32, #tpu.memory_space<vmem>>, vector<1x512xf32>
    %7 = vector.broadcast %6 : vector<1x512xf32> to vector<8x512xf32>
    %8 = arith.addf %5, %7 : vector<8x512xf32>
    %cst_5 = arith.constant 0.000000e+00 : f32
    %9 = vector.broadcast %cst_5 : f32 to vector<8x512xf32>
    %10 = arith.maximumf %8, %9 : vector<8x512xf32>
    %11 = vector.extract_strided_slice %2 {offsets = [0, 0], sizes = [8, 1], strides = [1, 1]} : vector<8x2xf32> to vector<8x1xf32>
    %c0_6 = arith.constant 0 : index
    %c0_7 = arith.constant 0 : index
    %12 = vector.load %arg5[%c0_6, %c0_7] : memref<2x512xf32, #tpu.memory_space<vmem>>, vector<1x512xf32>
    %13 = vector.broadcast %11 : vector<8x1xf32> to vector<8x512xf32>
    %14 = vector.broadcast %12 : vector<1x512xf32> to vector<8x512xf32>
    %15 = arith.mulf %13, %14 : vector<8x512xf32>
    %16 = vector.extract_strided_slice %2 {offsets = [0, 1], sizes = [8, 1], strides = [1, 1]} : vector<8x2xf32> to vector<8x1xf32>
    %c1 = arith.constant 1 : index
    %c0_8 = arith.constant 0 : index
    %17 = vector.load %arg5[%c1, %c0_8] : memref<2x512xf32, #tpu.memory_space<vmem>>, vector<1x512xf32>
    %18 = vector.broadcast %16 : vector<8x1xf32> to vector<8x512xf32>
    %19 = vector.broadcast %17 : vector<1x512xf32> to vector<8x512xf32>
    %20 = arith.mulf %18, %19 : vector<8x512xf32>
    %21 = arith.addf %15, %20 : vector<8x512xf32>
    %22 = arith.truncf %10 : vector<8x512xf32> to vector<8x512xbf16>
    %c0_9 = arith.constant 0 : index
    %c0_10 = arith.constant 0 : index
    %23 = vector.load %arg4[%c0_9, %c0_10] : memref<512x512xbf16, #tpu.memory_space<vmem>>, vector<512x512xbf16>
    %cst_11 = arith.constant dense<0.000000e+00> : vector<8x512xf32>
    %24 = tpu.matmul %22, %23, %cst_11 {dimension_numbers = #tpu.dot_dimension_numbers<[1], [0], [0], [1], [0, 0, 1, 1], [], []>} : vector<8x512xbf16>, vector<512x512xbf16>, vector<8x512xf32> -> vector<8x512xf32>
    %25 = arith.addf %24, %21 : vector<8x512xf32>
    %c0_12 = arith.constant 0 : index
    %c0_13 = arith.constant 0 : index
    %26 = vector.load %arg6[%c0_12, %c0_13] : memref<1x512xf32, #tpu.memory_space<vmem>>, vector<1x512xf32>
    %27 = vector.broadcast %26 : vector<1x512xf32> to vector<8x512xf32>
    %28 = arith.addf %25, %27 : vector<8x512xf32>
    %cst_14 = arith.constant 0.000000e+00 : f32
    %29 = vector.broadcast %cst_14 : f32 to vector<8x512xf32>
    %30 = arith.maximumf %28, %29 : vector<8x512xf32>
    %31 = arith.truncf %30 : vector<8x512xf32> to vector<8x512xbf16>
    %c0_15 = arith.constant 0 : index
    %c0_16 = arith.constant 0 : index
    %32 = vector.load %arg7[%c0_15, %c0_16] : memref<512x512xbf16, #tpu.memory_space<vmem>>, vector<512x512xbf16>
    %cst_17 = arith.constant dense<0.000000e+00> : vector<8x512xf32>
    %33 = tpu.matmul %31, %32, %cst_17 {dimension_numbers = #tpu.dot_dimension_numbers<[1], [0], [0], [1], [0, 0, 1, 1], [], []>} : vector<8x512xbf16>, vector<512x512xbf16>, vector<8x512xf32> -> vector<8x512xf32>
    %c0_18 = arith.constant 0 : index
    %c0_19 = arith.constant 0 : index
    %34 = vector.load %arg8[%c0_18, %c0_19] : memref<1x512xf32, #tpu.memory_space<vmem>>, vector<1x512xf32>
    %35 = vector.broadcast %34 : vector<1x512xf32> to vector<8x512xf32>
    %36 = arith.addf %33, %35 : vector<8x512xf32>
    %cst_20 = arith.constant 0.000000e+00 : f32
    %37 = vector.broadcast %cst_20 : f32 to vector<8x512xf32>
    %38 = arith.maximumf %36, %37 : vector<8x512xf32>
    %c0_21 = arith.constant 0 : index
    %c0_22 = arith.constant 0 : index
    %39 = vector.load %arg9[%c0_21, %c0_22] : memref<1x512xf32, #tpu.memory_space<vmem>>, vector<1x512xf32>
    %40 = vector.broadcast %39 : vector<1x512xf32> to vector<8x512xf32>
    %41 = arith.mulf %38, %40 : vector<8x512xf32>
    %cst_23 = arith.constant dense<0.000000e+00> : vector<8xf32>
    %42 = vector.multi_reduction <add>, %41, %cst_23 [1] : vector<8x512xf32> to vector<8xf32>
    %43 = vector.shape_cast %42 : vector<8xf32> to vector<8x1xf32>
    %c0_24 = arith.constant 0 : index
    %c0_25 = arith.constant 0 : index
    %44 = vector.load %arg10[%c0_24, %c0_25] : memref<1x1xf32, #tpu.memory_space<vmem>>, vector<1x1xf32>
    %45 = vector.broadcast %44 : vector<1x1xf32> to vector<8x1xf32>
    %46 = arith.addf %43, %45 : vector<8x1xf32>
    %c0_26 = arith.constant 0 : index
    %c0_27 = arith.constant 0 : index
    %47 = vector.load %arg11[%c0_26, %c0_27] : memref<8x1xf32, #tpu.memory_space<vmem>>, vector<8x1xf32>
    tpu.vector_store %arg11[%c0_26, %c0_27], %46 {strides = array<i32>} : memref<8x1xf32, #tpu.memory_space<vmem>>, vector<8x1xf32>,
    return
  }
  func.func @transform_0(%arg0: i32) -> (i32, i32) {
    %c0_i32 = arith.constant 0 : i32
    %c0_i32_0 = arith.constant 0 : i32
    return %arg0, %c0_i32 : i32, i32
  }
  func.func @transform_1(%arg0: i32) -> (i32, i32) {
    %c0_i32 = arith.constant 0 : i32
    %c0_i32_0 = arith.constant 0 : i32
    %c0_i32_1 = arith.constant 0 : i32
    return %c0_i32, %c0_i32_0 : i32, i32
  }
  func.func @transform_2(%arg0: i32) -> (i32, i32) {
    %c0_i32 = arith.constant 0 : i32
    %c0_i32_0 = arith.constant 0 : i32
    %c0_i32_1 = arith.constant 0 : i32
    return %c0_i32, %c0_i32_0 : i32, i32
  }
  func.func @transform_3(%arg0: i32) -> (i32, i32) {
    %c0_i32 = arith.constant 0 : i32
    %c0_i32_0 = arith.constant 0 : i32
    %c0_i32_1 = arith.constant 0 : i32
    return %c0_i32, %c0_i32_0 : i32, i32
  }
  func.func @transform_4(%arg0: i32) -> (i32, i32) {
    %c0_i32 = arith.constant 0 : i32
    %c0_i32_0 = arith.constant 0 : i32
    %c0_i32_1 = arith.constant 0 : i32
    return %c0_i32, %c0_i32_0 : i32, i32
  }
  func.func @transform_5(%arg0: i32) -> (i32, i32) {
    %c0_i32 = arith.constant 0 : i32
    %c0_i32_0 = arith.constant 0 : i32
    %c0_i32_1 = arith.constant 0 : i32
    return %c0_i32, %c0_i32_0 : i32, i32
  }
  func.func @transform_6(%arg0: i32) -> (i32, i32) {
    %c0_i32 = arith.constant 0 : i32
    %c0_i32_0 = arith.constant 0 : i32
    %c0_i32_1 = arith.constant 0 : i32
    return %c0_i32, %c0_i32_0 : i32, i32
  }
  func.func @transform_7(%arg0: i32) -> (i32, i32) {
    %c0_i32 = arith.constant 0 : i32
    %c0_i32_0 = arith.constant 0 : i32
    %c0_i32_1 = arith.constant 0 : i32
    return %c0_i32, %c0_i32_0 : i32, i32
  }
  func.func @transform_8(%arg0: i32) -> (i32, i32) {
    %c0_i32 = arith.constant 0 : i32
    %c0_i32_0 = arith.constant 0 : i32
    %c0_i32_1 = arith.constant 0 : i32
    return %c0_i32, %c0_i32_0 : i32, i32
  }
  func.func @transform_9(%arg0: i32) -> (i32, i32) {
    %c0_i32 = arith.constant 0 : i32
    %c0_i32_0 = arith.constant 0 : i32
    %c0_i32_1 = arith.constant 0 : i32
    return %c0_i32, %c0_i32_0 : i32, i32
  }
  func.func @transform_10(%arg0: i32) -> (i32, i32) {
    %c0_i32 = arith.constant 0 : i32
    %c0_i32_0 = arith.constant 0 : i32
    return %arg0, %c0_i32 : i32, i32
  }
}

</mosaic_0001>

<llo_original>
// kernel: tpu_custom_call.1
$region0: #{tpu_custom_call.1}
  #allocation0 [shape = 'u32[]', space=smem, size = 0x4, offset = 0x4, fixed_abs, tag = 'smem constant byte address 0x4 - core index']
  #allocation1 [shape = 'u32[144,128]{1,0:T(1,128)}', space=vmem, size = 0x12000, scoped, tag = 'internal scratch']
  #allocation2 [shape = 'f32[1,1]{1,0:T(1,128)S(1)}', space=vmem, size = 0x200, scoped, tag = 'scoped memory for tpu_custom_call.1']
  %s0 = inlined_call_operand.hbm [shape: f32[8,40], index: 0, kind: input, shape index: {}]
  %s1 = inlined_call_operand.hbm [shape: bf16[38,512], index: 1, kind: input, shape index: {}]
  %s2 = inlined_call_operand.vmem [shape: f32[1,512], index: 2, kind: input, shape index: {}]
  %s3 = inlined_call_operand.hbm [shape: bf16[512,512], index: 3, kind: input, shape index: {}]
  %s4 = inlined_call_operand.vmem [shape: f32[2,512], index: 4, kind: input, shape index: {}]
  %s5 = inlined_call_operand.vmem [shape: f32[1,512], index: 5, kind: input, shape index: {}]
  %s6 = inlined_call_operand.hbm [shape: bf16[512,512], index: 6, kind: input, shape index: {}]
  %s7 = inlined_call_operand.vmem [shape: f32[1,512], index: 7, kind: input, shape index: {}]
  %s8 = inlined_call_operand.vmem [shape: f32[1,512], index: 8, kind: input, shape index: {}]
  %s9 = inlined_call_operand.<no memory space> [shape: f32[1,1], index: 9, kind: input, shape index: {}]
  %s10 = inlined_call_operand.vmem [shape: f32[8,1], index: 10, kind: output, shape index: {}]
  %s11 = sld [smem:[#allocation0]]
  $region66: #{tpu_custom_call.1} parent=0
    _
  %s13 = ssub.s32 1, %s11
  %s14 = scalar_select 0, %s13, %s11
  %v15 = vstv %s9
  %16 = vst [vmem:[#allocation2] sm:$0x1] %v15
  $region1: #{tpu_custom_call.1} parent=0
    #allocation3 [shape = 'u8[4096]{0}', space=vmem, size = 0x1000, scoped, tag = 'input window, operand 0, single buffered']
    #allocation4 [shape = 's32[1]{0}', space=sflag, size = 0x4, scoped, tag = 'scoped memory for tpu_custom_call.1']
    #allocation5 [shape = 'u8[40960]{0}', space=vmem, size = 0xa000, scoped, tag = 'input window, operand 1, single buffered']
    #allocation6 [shape = 's32[1]{0}', space=sflag, size = 0x4, scoped, tag = 'scoped memory for tpu_custom_call.1']
    #allocation7 [shape = 'u8[524288]{0}', space=vmem, size = 0x80000, scoped, tag = 'input window, operand 3, single buffered']
    #allocation8 [shape = 'u8[524288]{0}', space=vmem, size = 0x80000, scoped, tag = 'input window, operand 6, single buffered']
    #allocation9 [shape = 's32[1]{0}', space=sflag, size = 0x4, scoped, tag = 'scoped memory for tpu_custom_call.1']
    %17 = vsyncpa [#allocation4], 0
    %18 = vsyncpa [#allocation6], 0
    %19 = vsyncpa [#allocation9], 0
    // Predicated region
    $region2: #{tpu_custom_call.1} parent=1 // pred_check
      _
    $region3: #{tpu_custom_call.1} parent=1 // pred_check_branch
      %21 = sbr.rel (0) target = $region5
    $region4: #{tpu_custom_call.1} parent=1 // pred_region
      %s23 = ssub.s32 128, 128
      %24 = vsyncadd [#allocation4], %s23
      %s26 = sshll.u32 [#allocation3], 4
      %s27 = int_to_ptr.vmem [resolvable:$true] %s26
      %29 = dma.hbm_to_vmem [thread:$0]  %s0, 128, %s27, [#allocation4]
    $region5: #{tpu_custom_call.1} parent=1 // pred_fallthru
      _
    // Predicated region
    $region6: #{tpu_custom_call.1} parent=1 // pred_check
      _
    $region7: #{tpu_custom_call.1} parent=1 // pred_check_branch
      %31 = sbr.rel (0) target = $region9
    $region8: #{tpu_custom_call.1} parent=1 // pred_region
      %s33 = ssub.s32 1280, 1280
      %34 = vsyncadd [#allocation6], %s33
      %s35 = sshll.u32 [#allocation5], 4
      %s36 = int_to_ptr.vmem [resolvable:$true] %s35
      %41 = dma.hbm_to_vmem [thread:$0]  %s1, 1280, %s36, [#allocation6], 256, 256, 16
    $region9: #{tpu_custom_call.1} parent=1 // pred_fallthru
      _
    // Predicated region
    $region10: #{tpu_custom_call.1} parent=1 // pred_check
      _
    $region11: #{tpu_custom_call.1} parent=1 // pred_check_branch
      %43 = sbr.rel (0) target = $region13
    $region12: #{tpu_custom_call.1} parent=1 // pred_region
      _
    $region13: #{tpu_custom_call.1} parent=1 // pred_fallthru
      _
    // Predicated region
    $region14: #{tpu_custom_call.1} parent=1 // pred_check
      _
    $region15: #{tpu_custom_call.1} parent=1 // pred_check_branch
      %45 = sbr.rel (0) target = $region17
    $region16: #{tpu_custom_call.1} parent=1 // pred_region
      %s47 = ssub.s32 16384, 16384
      %48 = vsyncadd [#allocation6], %s47
      %s49 = sshll.u32 [#allocation7], 4
      %s50 = int_to_ptr.vmem [resolvable:$true] %s49
      %55 = dma.hbm_to_vmem [thread:$0]  %s3, 16384, %s50, [#allocation6], 256, 256, 16
    $region17: #{tpu_custom_call.1} parent=1 // pred_fallthru
      _
    // Predicated region
    $region18: #{tpu_custom_call.1} parent=1 // pred_check
      _
    $region19: #{tpu_custom_call.1} parent=1 // pred_check_branch
      %57 = sbr.rel (0) target = $region21
    $region20: #{tpu_custom_call.1} parent=1 // pred_region
      _
    $region21: #{tpu_custom_call.1} parent=1 // pred_fallthru
      _
    // Predicated region
    $region22: #{tpu_custom_call.1} parent=1 // pred_check
      _
    $region23: #{tpu_custom_call.1} parent=1 // pred_check_branch
      %59 = sbr.rel (0) target = $region25
    $region24: #{tpu_custom_call.1} parent=1 // pred_region
      _
    $region25: #{tpu_custom_call.1} parent=1 // pred_fallthru
      _
    // Predicated region
    $region26: #{tpu_custom_call.1} parent=1 // pred_check
      _
    $region27: #{tpu_custom_call.1} parent=1 // pred_check_branch
      %61 = sbr.rel (0) target = $region29
    $region28: #{tpu_custom_call.1} parent=1 // pred_region
      %s63 = ssub.s32 16384, 16384
      %64 = vsyncadd [#allocation9], %s63
      %s65 = sshll.u32 [#allocation8], 4
      %s66 = int_to_ptr.vmem [resolvable:$true] %s65
      %71 = dma.hbm_to_vmem [thread:$0]  %s6, 16384, %s66, [#allocation9], 256, 256, 16
    $region29: #{tpu_custom_call.1} parent=1 // pred_fallthru
      _
    // Predicated region
    $region30: #{tpu_custom_call.1} parent=1 // pred_check
      _
    $region31: #{tpu_custom_call.1} parent=1 // pred_check_branch
      %73 = sbr.rel (0) target = $region33
    $region32: #{tpu_custom_call.1} parent=1 // pred_region
      _
    $region33: #{tpu_custom_call.1} parent=1 // pred_fallthru
      _
    // Predicated region
    $region34: #{tpu_custom_call.1} parent=1 // pred_check
      _
    $region35: #{tpu_custom_call.1} parent=1 // pred_check_branch
      %75 = sbr.rel (0) target = $region37
    $region36: #{tpu_custom_call.1} parent=1 // pred_region
      _
    $region37: #{tpu_custom_call.1} parent=1 // pred_fallthru
      _
    // Predicated region
    $region38: #{tpu_custom_call.1} parent=1 // pred_check
      _
    $region39: #{tpu_custom_call.1} parent=1 // pred_check_branch
      %77 = sbr.rel (0) target = $region41
    $region40: #{tpu_custom_call.1} parent=1 // pred_region
      _
    $region41: #{tpu_custom_call.1} parent=1 // pred_fallthru
      _
    // Predicated region
    $region42: #{tpu_custom_call.1} parent=1 // pred_check
      _
    $region43: #{tpu_custom_call.1} parent=1 // pred_check_branch
      %79 = sbr.rel (0) target = $region45
    $region44: #{tpu_custom_call.1} parent=1 // pred_region
      %80 = dma.done [#allocation4], 128
    $region45: #{tpu_custom_call.1} parent=1 // pred_fallthru
      _
    // Predicated region
    $region46: #{tpu_custom_call.1} parent=1 // pred_check
      _
    $region47: #{tpu_custom_call.1} parent=1 // pred_check_branch
      %82 = sbr.rel (0) target = $region49
    $region48: #{tpu_custom_call.1} parent=1 // pred_region
      %83 = dma.done [#allocation6], 1280
    $region49: #{tpu_custom_call.1} parent=1 // pred_fallthru
      _
    // Predicated region
    $region50: #{tpu_custom_call.1} parent=1 // pred_check
      _
    $region51: #{tpu_custom_call.1} parent=1 // pred_check_branch
      %85 = sbr.rel (0) target = $region53
    $region52: #{tpu_custom_call.1} parent=1 // pred_region
      %86 = dma.done [#allocation6], 16384
    $region53: #{tpu_custom_call.1} parent=1 // pred_fallthru
      _
    // Predicated region
    $region54: #{tpu_custom_call.1} parent=1 // pred_check
      _
    $region55: #{tpu_custom_call.1} parent=1 // pred_check_branch
      %88 = sbr.rel (0) target = $region57
    $region56: #{tpu_custom_call.1} parent=1 // pred_region
      %89 = dma.done [#allocation9], 16384
    $region57: #{tpu_custom_call.1} parent=1 // pred_fallthru
      _
    %v91 = vld [vmem:[#allocation3] sm:$0xff]
    %v92 = vpack.c.bf16 %v91, %v91
    %v93 = vld [vmem:[#allocation5] sm:$0xff]
    %v94 = vld [vmem:[#allocation5 + $0x8] sm:$0xff]
    %v95 = vld [vmem:[#allocation5 + $0x10] sm:$0xff]
    %v96 = vld [vmem:[#allocation5 + $0x18] sm:$0xff]
    %v97 = vld [vmem:[#allocation5 + $0x20] sm:$0xff]
    %v98 = vld [vmem:[#allocation5 + $0x28] sm:$0xff]
    %v99 = vld [vmem:[#allocation5 + $0x30] sm:$0xff]
    %v100 = vld [vmem:[#allocation5 + $0x38] sm:$0xff]
    %v101 = vld [vmem:[#allocation5 + $0x40] sm:$0x77]
    %v102 = vld [vmem:[#allocation5 + $0x48] sm:$0x77]
    %v103 = vld [vmem:[%s2] sm:$0xf]
    %v105 = vlaneseq
    %v106 = vshrl.u32 %v105, 7
    %v107 = vsub.s32 0, %v106
    %v108 = vrot.slane %v103, %v107
    %v109 = vlaneseq
    %v110 = vshrl.u32 %v109, 7
    %v111 = vsub.s32 1, %v110
    %v112 = vrot.slane %v103, %v111
    %v113 = vlaneseq
    %v114 = vshrl.u32 %v113, 7
    %v115 = vsub.s32 2, %v114
    %v116 = vrot.slane %v103, %v115
    %v117 = vlaneseq
    %v118 = vshrl.u32 %v117, 7
    %v119 = vsub.s32 3, %v118
    %v120 = vrot.slane %v103, %v119
    %v135 = vunpack.c.l.b16 %v93
    %v136 = vunpack.c.h.b16 %v93
    %v137 = vunpack.c.l.b16 %v94
    %v138 = vunpack.c.h.b16 %v94
    %v139 = vunpack.c.l.b16 %v95
    %v140 = vunpack.c.h.b16 %v95
    %v141 = vunpack.c.l.b16 %v96
    %v142 = vunpack.c.h.b16 %v96
    %v143 = vunpack.c.l.b16 %v97
    %v144 = vunpack.c.h.b16 %v97
    %v145 = vunpack.c.l.b16 %v98
    %v146 = vunpack.c.h.b16 %v98
    %v147 = vunpack.c.l.b16 %v99
    %v148 = vunpack.c.h.b16 %v99
    %v149 = vunpack.c.l.b16 %v100
    %v150 = vunpack.c.h.b16 %v100
    %v151 = vunpack.c.l.b16 %v101
    %v152 = vunpack.c.h.b16 %v101
    %v153 = vunpack.c.l.b16 %v102
    %v154 = vunpack.c.h.b16 %v102
    %v155 = vpack.c.b16 %v139, %v135
    %v156 = vpack.c.b16 %v140, %v136
    %v157 = vpack.c.b16 %v141, %v137
    %v158 = vpack.c.b16 %v142, %v138
    %v159 = vpack.c.b16 %v147, %v143
    %v160 = vpack.c.b16 %v148, %v144
    %v161 = vpack.c.b16 %v149, %v145
    %v162 = vpack.c.b16 %v150, %v146
    %v163 = vpack.c.b16 %v151, %v151
    %v164 = vpack.c.b16 %v152, %v152
    %v165 = vpack.c.b16 %v153, %v153
    %v166 = vpack.c.b16 %v154, %v154
    %vm175 = vcmask 310272
    %v177 = vsel %vm175, %v92, 0
    %vm179 = vcmask 1042432
    %v181 = vsel %vm179, %v163, 0
    %v184 = vsel %vm179, %v164, 0
    %v187 = vsel %vm179, %v165, 0
    %v190 = vsel %vm179, %v166, 0
    %192 = vmatprep.subr.bf16.mxu0 %v156
    %193 = vmatpush1.bf16.msra.mxu0 %v155
    %194 = vmatprep.subr.bf16.mxu0 %v160
    %195 = vmatpush1.bf16.msra.mxu0 %v159
    %196 = vmatprep.subr.bf16.mxu0 %v184
    %197 = vmatpush1.bf16.msra.mxu0 %v181
    %198 = vmatprep.subr.bf16.mxu0 0
    %199 = vmatpush1.bf16.msra.mxu0 0
    %200 = vmatprep.subr.bf16.mxu0 0
    %201 = vmatpush1.bf16.msra.mxu0 0
    %202 = vmatprep.subr.bf16.mxu0 0
    %203 = vmatpush1.bf16.msra.mxu0 0
    %204 = vmatprep.subr.bf16.mxu0 0
    %205 = vmatpush1.bf16.msra.mxu0 0
    %206 = vmatprep.subr.bf16.mxu0 0
    %207 = vmatpush1.bf16.msra.mxu0 0
    %208 = vmatprep.subr.bf16.mxu0 0
    %209 = vmatpush1.bf16.msra.mxu0 0
    %210 = vmatprep.subr.bf16.mxu0 0
    %211 = vmatpush1.bf16.msra.mxu0 0
    %212 = vmatprep.subr.bf16.mxu0 0
    %213 = vmatpush1.bf16.msra.mxu0 0
    %214 = vmatprep.subr.bf16.mxu0 0
    %215 = vmatpush1.bf16.msra.mxu0 0
    %216 = vmatprep.subr.bf16.mxu0 0
    %217 = vmatpush1.bf16.msra.mxu0 0
    %218 = vmatprep.subr.bf16.mxu0 0
    %219 = vmatpush1.bf16.msra.mxu0 0
    %220 = vmatprep.subr.bf16.mxu0 0
    %221 = vmatpush1.bf16.msra.mxu0 0
    %222 = vmatprep.subr.bf16.mxu0 0
    %223 = vmatpush1.bf16.msra.mxu0 0
    %224 = vmatprep.mubr.bf16.mxu0 0
    %225 = vmatmul.mubr.bf16.gmra.mrb[0].mxu0 %v177
    %v226 = vpop.f32.mrb[0].mxu0
    %v227 = vadd.f32 %v108, %v226
    %v228 = vpop.f32.mrb[0].mxu0
    %v229 = vadd.f32 %v112, %v228
    %v230 = vpop.f32.mrb[0].mxu0
    %v231 = vpop.f32.mrb[0].mxu0
    %232 = vdwg.mxu0
    %233 = vmatprep.subr.bf16.mxu0 %v158
    %234 = vmatpush1.bf16.msra.mxu0 %v157
    %235 = vmatprep.subr.bf16.mxu0 %v162
    %236 = vmatpush1.bf16.msra.mxu0 %v161
    %237 = vmatprep.subr.bf16.mxu0 %v190
    %238 = vmatpush1.bf16.msra.mxu0 %v187
    %239 = vmatprep.subr.bf16.mxu0 0
    %240 = vmatpush1.bf16.msra.mxu0 0
    %241 = vmatprep.subr.bf16.mxu0 0
    %242 = vmatpush1.bf16.msra.mxu0 0
    %243 = vmatprep.subr.bf16.mxu0 0
    %244 = vmatpush1.bf16.msra.mxu0 0
    %245 = vmatprep.subr.bf16.mxu0 0
    %246 = vmatpush1.bf16.msra.mxu0 0
    %247 = vmatprep.subr.bf16.mxu0 0
    %248 = vmatpush1.bf16.msra.mxu0 0
    %249 = vmatprep.subr.bf16.mxu0 0
    %250 = vmatpush1.bf16.msra.mxu0 0
    %251 = vmatprep.subr.bf16.mxu0 0
    %252 = vmatpush1.bf16.msra.mxu0 0
    %253 = vmatprep.subr.bf16.mxu0 0
    %254 = vmatpush1.bf16.msra.mxu0 0
    %255 = vmatprep.subr.bf16.mxu0 0
    %256 = vmatpush1.bf16.msra.mxu0 0
    %257 = vmatprep.subr.bf16.mxu0 0
    %258 = vmatpush1.bf16.msra.mxu0 0
    %259 = vmatprep.subr.bf16.mxu0 0
    %260 = vmatpush1.bf16.msra.mxu0 0
    %261 = vmatprep.subr.bf16.mxu0 0
    %262 = vmatpush1.bf16.msra.mxu0 0
    %263 = vmatprep.subr.bf16.mxu0 0
    %264 = vmatpush1.bf16.msra.mxu0 0
    %265 = vmatprep.mubr.bf16.mxu0 0
    %266 = vmatmul.mubr.bf16.gmra.mrb[0].mxu0 %v177
    %v267 = vpop.f32.mrb[0].mxu0
    %v268 = vadd.f32 %v116, %v267
    %v269 = vpop.f32.mrb[0].mxu0
    %v270 = vadd.f32 %v120, %v269
    %v271 = vpop.f32.mrb[0].mxu0
    %v272 = vpop.f32.mrb[0].mxu0
    %273 = vdwg.mxu0
    %v274 = vmax.f32 %v227, 0.0
    %v275 = vmax.f32 %v229, 0.0
    %v276 = vmax.f32 %v268, 0.0
    %v277 = vmax.f32 %v270, 0.0
    %v278 = vld [vmem:[%s4] ss:$2 sm:$0xf]
    %280 = vset.pattern.permute.xlu0 38
    %281 = vperm.xlu0 %280, %v91
    %v282 = vpop.permute.xlu0 %281
    %v285 = vlaneseq
    %v286 = vshrl.u32 %v285, 7
    %v287 = vsub.s32 0, %v286
    %v288 = vrot.slane %v278, %v287
    %v289 = vlaneseq
    %v290 = vshrl.u32 %v289, 7
    %v291 = vsub.s32 1, %v290
    %v292 = vrot.slane %v278, %v291
    %v293 = vlaneseq
    %v294 = vshrl.u32 %v293, 7
    %v295 = vsub.s32 2, %v294
    %v296 = vrot.slane %v278, %v295
    %v297 = vlaneseq
    %v298 = vshrl.u32 %v297, 7
    %v299 = vsub.s32 3, %v298
    %v300 = vrot.slane %v278, %v299
    %v305 = vmul.f32 %v282, %v288
    %v306 = vmul.f32 %v282, %v292
    %v307 = vmul.f32 %v282, %v296
    %v308 = vmul.f32 %v282, %v300
    %s309 = scalar_lea.vmem %s4, 1
    %v310 = vld [vmem:[%s309] ss:$2 sm:$0xf]
    %311 = vset.pattern.permute.xlu0 39
    %312 = vperm.xlu0 %311, %v91
    %v313 = vpop.permute.xlu0 %312
    %v316 = vlaneseq
    %v317 = vshrl.u32 %v316, 7
    %v318 = vsub.s32 0, %v317
    %v319 = vrot.slane %v310, %v318
    %v320 = vlaneseq
    %v321 = vshrl.u32 %v320, 7
    %v322 = vsub.s32 1, %v321
    %v323 = vrot.slane %v310, %v322
    %v324 = vlaneseq
    %v325 = vshrl.u32 %v324, 7
    %v326 = vsub.s32 2, %v325
    %v327 = vrot.slane %v310, %v326
    %v328 = vlaneseq
    %v329 = vshrl.u32 %v328, 7
    %v330 = vsub.s32 3, %v329
    %v331 = vrot.slane %v310, %v330
    %v336 = vmul.f32 %v313, %v319
    %v337 = vmul.f32 %v313, %v323
    %v338 = vmul.f32 %v313, %v327
    %v339 = vmul.f32 %v313, %v331
    %v340 = vadd.f32 %v305, %v336
    %v341 = vadd.f32 %v306, %v337
    %v342 = vadd.f32 %v307, %v338
    %v343 = vadd.f32 %v308, %v339
    %v344 = vpack.c.bf16 %v274, %v274
    %v345 = vpack.c.bf16 %v275, %v275
    %v346 = vpack.c.bf16 %v276, %v276
    %v347 = vpack.c.bf16 %v277, %v277
    %v348 = vld [vmem:[#allocation7] sm:$0xff]
    %v349 = vld [vmem:[#allocation7 + $0x8] sm:$0xff]
    %v350 = vld [vmem:[#allocation7 + $0x10] sm:$0xff]
    %v351 = vld [vmem:[#allocation7 + $0x18] sm:$0xff]
    %v352 = vld [vmem:[#allocation7 + $0x20] sm:$0xff]
    %v353 = vld [vmem:[#allocation7 + $0x28] sm:$0xff]
    %v354 = vld [vmem:[#allocation7 + $0x30] sm:$0xff]
    %v355 = vld [vmem:[#allocation7 + $0x38] sm:$0xff]
    %v356 = vld [vmem:[#allocation7 + $0x40] sm:$0xff]
    %v357 = vld [vmem:[#allocation7 + $0x48] sm:$0xff]
    %v358 = vld [vmem:[#allocation7 + $0x50] sm:$0xff]
    %v359 = vld [vmem:[#allocation7 + $0x58] sm:$0xff]
    %v360 = vld [vmem:[#allocation7 + $0x60] sm:$0xff]
    %v361 = vld [vmem:[#allocation7 + $0x68] sm:$0xff]
    %v362 = vld [vmem:[#allocation7 + $0x70] sm:$0xff]
    %v363 = vld [vmem:[#allocation7 + $0x78] sm:$0xff]
    %v364 = vld [vmem:[#allocation7 + $0x80] sm:$0xff]
    %v365 = vld [vmem:[#allocation7 + $0x88] sm:$0xff]
    %v366 = vld [vmem:[#allocation7 + $0x90] sm:$0xff]
    %v367 = vld [vmem:[#allocation7 + $0x98] sm:$0xff]
    %v368 = vld [vmem:[#allocation7 + $0xa0] sm:$0xff]
    %v369 = vld [vmem:[#allocation7 + $0xa8] sm:$0xff]
    %v370 = vld [vmem:[#allocation7 + $0xb0] sm:$0xff]
    %v371 = vld [vmem:[#allocation7 + $0xb8] sm:$0xff]
    %v372 = vld [vmem:[#allocation7 + $0xc0] sm:$0xff]
    %v373 = vld [vmem:[#allocation7 + $0xc8] sm:$0xff]
    %v374 = vld [vmem:[#allocation7 + $0xd0] sm:$0xff]
    %v375 = vld [vmem:[#allocation7 + $0xd8] sm:$0xff]
    %v376 = vld [vmem:[#allocation7 + $0xe0] sm:$0xff]
    %v377 = vld [vmem:[#allocation7 + $0xe8] sm:$0xff]
    %v378 = vld [vmem:[#allocation7 + $0xf0] sm:$0xff]
    %v379 = vld [vmem:[#allocation7 + $0xf8] sm:$0xff]
    %v380 = vld [vmem:[#allocation7 + $0x100] sm:$0xff]
    %v381 = vld [vmem:[#allocation7 + $0x108] sm:$0xff]
    %v382 = vld [vmem:[#allocation7 + $0x110] sm:$0xff]
    %v383 = vld [vmem:[#allocation7 + $0x118] sm:$0xff]
    %v384 = vld [vmem:[#allocation7 + $0x120] sm:$0xff]
    %v385 = vld [vmem:[#allocation7 + $0x128] sm:$0xff]
    %v386 = vld [vmem:[#allocation7 + $0x130] sm:$0xff]
    %v387 = vld [vmem:[#allocation7 + $0x138] sm:$0xff]
    %v388 = vld [vmem:[#allocation7 + $0x140] sm:$0xff]
    %v389 = vld [vmem:[#allocation7 + $0x148] sm:$0xff]
    %v390 = vld [vmem:[#allocation7 + $0x150] sm:$0xff]
    %v391 = vld [vmem:[#allocation7 + $0x158] sm:$0xff]
    %v392 = vld [vmem:[#allocation7 + $0x160] sm:$0xff]
    %v393 = vld [vmem:[#allocation7 + $0x168] sm:$0xff]
    %v394 = vld [vmem:[#allocation7 + $0x170] sm:$0xff]
    %v395 = vld [vmem:[#allocation7 + $0x178] sm:$0xff]
    %v396 = vld [vmem:[#allocation7 + $0x180] sm:$0xff]
    %v397 = vld [vmem:[#allocation7 + $0x188] sm:$0xff]
    %v398 = vld [vmem:[#allocation7 + $0x190] sm:$0xff]
    %v399 = vld [vmem:[#allocation7 + $0x198] sm:$0xff]
    %v400 = vld [vmem:[#allocation7 + $0x1a0] sm:$0xff]
    %v401 = vld [vmem:[#allocation7 + $0x1a8] sm:$0xff]
    %v402 = vld [vmem:[#allocation7 + $0x1b0] sm:$0xff]
    %v403 = vld [vmem:[#allocation7 + $0x1b8] sm:$0xff]
    %v404 = vld [vmem:[#allocation7 + $0x1c0] sm:$0xff]
    %v405 = vld [vmem:[#allocation7 + $0x1c8] sm:$0xff]
    %v406 = vld [vmem:[#allocation7 + $0x1d0] sm:$0xff]
    %v407 = vld [vmem:[#allocation7 + $0x1d8] sm:$0xff]
    %v408 = vld [vmem:[#allocation7 + $0x1e0] sm:$0xff]
    %v409 = vld [vmem:[#allocation7 + $0x1e8] sm:$0xff]
    %v410 = vld [vmem:[#allocation7 + $0x1f0] sm:$0xff]
    %v411 = vld [vmem:[#allocation7 + $0x1f8] sm:$0xff]
    %v412 = vld [vmem:[#allocation7 + $0x200] sm:$0xff]
    %v413 = vld [vmem:[#allocation7 + $0x208] sm:$0xff]
    %v414 = vld [vmem:[#allocation7 + $0x210] sm:$0xff]
    %v415 = vld [vmem:[#allocation7 + $0x218] sm:$0xff]
    %v416 = vld [vmem:[#allocation7 + $0x220] sm:$0xff]
    %v417 = vld [vmem:[#allocation7 + $0x228] sm:$0xff]
    %v418 = vld [vmem:[#allocation7 + $0x230] sm:$0xff]
    %v419 = vld [vmem:[#allocation7 + $0x238] sm:$0xff]
    %v420 = vld [vmem:[#allocation7 + $0x240] sm:$0xff]
    %v421 = vld [vmem:[#allocation7 + $0x248] sm:$0xff]
    %v422 = vld [vmem:[#allocation7 + $0x250] sm:$0xff]
    %v423 = vld [vmem:[#allocation7 + $0x258] sm:$0xff]
    %v424 = vld [vmem:[#allocation7 + $0x260] sm:$0xff]
    %v425 = vld [vmem:[#allocation7 + $0x268] sm:$0xff]
    %v426 = vld [vmem:[#allocation7 + $0x270] sm:$0xff]
    %v427 = vld [vmem:[#allocation7 + $0x278] sm:$0xff]
    %v428 = vld [vmem:[#allocation7 + $0x280] sm:$0xff]
    %v429 = vld [vmem:[#allocation7 + $0x288] sm:$0xff]
    %v430 = vld [vmem:[#allocation7 + $0x290] sm:$0xff]
    %v431 = vld [vmem:[#allocation7 + $0x298] sm:$0xff]
    %v432 = vld [vmem:[#allocation7 + $0x2a0] sm:$0xff]
    %v433 = vld [vmem:[#allocation7 + $0x2a8] sm:$0xff]
    %v434 = vld [vmem:[#allocation7 + $0x2b0] sm:$0xff]
    %v435 = vld [vmem:[#allocation7 + $0x2b8] sm:$0xff]
    %v436 = vld [vmem:[#allocation7 + $0x2c0] sm:$0xff]
    %v437 = vld [vmem:[#allocation7 + $0x2c8] sm:$0xff]
    %v438 = vld [vmem:[#allocation7 + $0x2d0] sm:$0xff]
    %v439 = vld [vmem:[#allocation7 + $0x2d8] sm:$0xff]
    %v440 = vld [vmem:[#allocation7 + $0x2e0] sm:$0xff]
    %v441 = vld [vmem:[#allocation7 + $0x2e8] sm:$0xff]
    %v442 = vld [vmem:[#allocation7 + $0x2f0] sm:$0xff]
    %v443 = vld [vmem:[#allocation7 + $0x2f8] sm:$0xff]
    %v444 = vld [vmem:[#allocation7 + $0x300] sm:$0xff]
    %v445 = vld [vmem:[#allocation7 + $0x308] sm:$0xff]
    %v446 = vld [vmem:[#allocation7 + $0x310] sm:$0xff]
    %v447 = vld [vmem:[#allocation7 + $0x318] sm:$0xff]
    %v448 = vld [vmem:[#allocation7 + $0x320] sm:$0xff]
    %v449 = vld [vmem:[#allocation7 + $0x328] sm:$0xff]
    %v450 = vld [vmem:[#allocation7 + $0x330] sm:$0xff]
    %v451 = vld [vmem:[#allocation7 + $0x338] sm:$0xff]
    %v452 = vld [vmem:[#allocation7 + $0x340] sm:$0xff]
    %v453 = vld [vmem:[#allocation7 + $0x348] sm:$0xff]
    %v454 = vld [vmem:[#allocation7 + $0x350] sm:$0xff]
    %v455 = vld [vmem:[#allocation7 + $0x358] sm:$0xff]
    %v456 = vld [vmem:[#allocation7 + $0x360] sm:$0xff]
    %v457 = vld [vmem:[#allocation7 + $0x368] sm:$0xff]
    %v458 = vld [vmem:[#allocation7 + $0x370] sm:$0xff]
    %v459 = vld [vmem:[#allocation7 + $0x378] sm:$0xff]
    %v460 = vld [vmem:[#allocation7 + $0x380] sm:$0xff]
    %v461 = vld [vmem:[#allocation7 + $0x388] sm:$0xff]
    %v462 = vld [vmem:[#allocation7 + $0x390] sm:$0xff]
    %v463 = vld [vmem:[#allocation7 + $0x398] sm:$0xff]
    %v464 = vld [vmem:[#allocation7 + $0x3a0] sm:$0xff]
    %v465 = vld [vmem:[#allocation7 + $0x3a8] sm:$0xff]
    %v466 = vld [vmem:[#allocation7 + $0x3b0] sm:$0xff]
    %v467 = vld [vmem:[#allocation7 + $0x3b8] sm:$0xff]
    %v468 = vld [vmem:[#allocation7 + $0x3c0] sm:$0xff]
    %v469 = vld [vmem:[#allocation7 + $0x3c8] sm:$0xff]
    %v470 = vld [vmem:[#allocation7 + $0x3d0] sm:$0xff]
    %v471 = vld [vmem:[#allocation7 + $0x3d8] sm:$0xff]
    %v472 = vld [vmem:[#allocation7 + $0x3e0] sm:$0xff]
    %v473 = vld [vmem:[#allocation7 + $0x3e8] sm:$0xff]
    %v474 = vld [vmem:[#allocation7 + $0x3f0] sm:$0xff]
    %v475 = vld [vmem:[#allocation7 + $0x3f8] sm:$0xff]
    %v604 = vunpack.c.l.b16 %v348
    %v605 = vunpack.c.h.b16 %v348
    %v606 = vunpack.c.l.b16 %v349
    %v607 = vunpack.c.h.b16 %v349
    %v608 = vunpack.c.l.b16 %v350
    %v609 = vunpack.c.h.b16 %v350
    %v610 = vunpack.c.l.b16 %v351
    %v611 = vunpack.c.h.b16 %v351
    %v612 = vunpack.c.l.b16 %v352
    %v613 = vunpack.c.h.b16 %v352
    %v614 = vunpack.c.l.b16 %v353
    %v615 = vunpack.c.h.b16 %v353
    %v616 = vunpack.c.l.b16 %v354
    %v617 = vunpack.c.h.b16 %v354
    %v618 = vunpack.c.l.b16 %v355
    %v619 = vunpack.c.h.b16 %v355
    %v620 = vunpack.c.l.b16 %v356
    %v621 = vunpack.c.h.b16 %v356
    %v622 = vunpack.c.l.b16 %v357
    %v623 = vunpack.c.h.b16 %v357
    %v624 = vunpack.c.l.b16 %v358
    %v625 = vunpack.c.h.b16 %v358
    %v626 = vunpack.c.l.b16 %v359
    %v627 = vunpack.c.h.b16 %v359
    %v628 = vunpack.c.l.b16 %v360
    %v629 = vunpack.c.h.b16 %v360
    %v630 = vunpack.c.l.b16 %v361
    %v631 = vunpack.c.h.b16 %v361
    %v632 = vunpack.c.l.b16 %v362
    %v633 = vunpack.c.h.b16 %v362
    %v634 = vunpack.c.l.b16 %v363
    %v635 = vunpack.c.h.b16 %v363
    %v636 = vunpack.c.l.b16 %v364
    %v637 = vunpack.c.h.b16 %v364
    %v638 = vunpack.c.l.b16 %v365
    %v639 = vunpack.c.h.b16 %v365
    %v640 = vunpack.c.l.b16 %v366
    %v641 = vunpack.c.h.b16 %v366
    %v642 = vunpack.c.l.b16 %v367
    %v643 = vunpack.c.h.b16 %v367
    %v644 = vunpack.c.l.b16 %v368
    %v645 = vunpack.c.h.b16 %v368
    %v646 = vunpack.c.l.b16 %v369
    %v647 = vunpack.c.h.b16 %v369
    %v648 = vunpack.c.l.b16 %v370
    %v649 = vunpack.c.h.b16 %v370
    %v650 = vunpack.c.l.b16 %v371
    %v651 = vunpack.c.h.b16 %v371
    %v652 = vunpack.c.l.b16 %v372
    %v653 = vunpack.c.h.b16 %v372
    %v654 = vunpack.c.l.b16 %v373
    %v655 = vunpack.c.h.b16 %v373
    %v656 = vunpack.c.l.b16 %v374
    %v657 = vunpack.c.h.b16 %v374
    %v658 = vunpack.c.l.b16 %v375
    %v659 = vunpack.c.h.b16 %v375
    %v660 = vunpack.c.l.b16 %v376
    %v661 = vunpack.c.h.b16 %v376
    %v662 = vunpack.c.l.b16 %v377
    %v663 = vunpack.c.h.b16 %v377
    %v664 = vunpack.c.l.b16 %v378
    %v665 = vunpack.c.h.b16 %v378
    %v666 = vunpack.c.l.b16 %v379
    %v667 = vunpack.c.h.b16 %v379
    %v668 = vunpack.c.l.b16 %v380
    %v669 = vunpack.c.h.b16 %v380
    %v670 = vunpack.c.l.b16 %v381
    %v671 = vunpack.c.h.b16 %v381
    %v672 = vunpack.c.l.b16 %v382
    %v673 = vunpack.c.h.b16 %v382
    %v674 = vunpack.c.l.b16 %v383
    %v675 = vunpack.c.h.b16 %v383
    %v676 = vunpack.c.l.b16 %v384
    %v677 = vunpack.c.h.b16 %v384
    %v678 = vunpack.c.l.b16 %v385
    %v679 = vunpack.c.h.b16 %v385
    %v680 = vunpack.c.l.b16 %v386
    %v681 = vunpack.c.h.b16 %v386
    %v682 = vunpack.c.l.b16 %v387
    %v683 = vunpack.c.h.b16 %v387
    %v684 = vunpack.c.l.b16 %v388
    %v685 = vunpack.c.h.b16 %v388
    %v686 = vunpack.c.l.b16 %v389
    %v687 = vunpack.c.h.b16 %v389
    %v688 = vunpack.c.l.b16 %v390
    %v689 = vunpack.c.h.b16 %v390
    %v690 = vunpack.c.l.b16 %v391
    %v691 = vunpack.c.h.b16 %v391
    %v692 = vunpack.c.l.b16 %v392
    %v693 = vunpack.c.h.b16 %v392
    %v694 = vunpack.c.l.b16 %v393
    %v695 = vunpack.c.h.b16 %v393
    %v696 = vunpack.c.l.b16 %v394
    %v697 = vunpack.c.h.b16 %v394
    %v698 = vunpack.c.l.b16 %v395
    %v699 = vunpack.c.h.b16 %v395
    %v700 = vunpack.c.l.b16 %v396
    %v701 = vunpack.c.h.b16 %v396
    %v702 = vunpack.c.l.b16 %v397
    %v703 = vunpack.c.h.b16 %v397
    %v704 = vunpack.c.l.b16 %v398
    %v705 = vunpack.c.h.b16 %v398
    %v706 = vunpack.c.l.b16 %v399
    %v707 = vunpack.c.h.b16 %v399
    %v708 = vunpack.c.l.b16 %v400
    %v709 = vunpack.c.h.b16 %v400
    %v710 = vunpack.c.l.b16 %v401
    %v711 = vunpack.c.h.b16 %v401
    %v712 = vunpack.c.l.b16 %v402
    %v713 = vunpack.c.h.b16 %v402
    %v714 = vunpack.c.l.b16 %v403
    %v715 = vunpack.c.h.b16 %v403
    %v716 = vunpack.c.l.b16 %v404
    %v717 = vunpack.c.h.b16 %v404
    %v718 = vunpack.c.l.b16 %v405
    %v719 = vunpack.c.h.b16 %v405
    %v720 = vunpack.c.l.b16 %v406
    %v721 = vunpack.c.h.b16 %v406
    %v722 = vunpack.c.l.b16 %v407
    %v723 = vunpack.c.h.b16 %v407
    %v724 = vunpack.c.l.b16 %v408
    %v725 = vunpack.c.h.b16 %v408
    %v726 = vunpack.c.l.b16 %v409
    %v727 = vunpack.c.h.b16 %v409
    %v728 = vunpack.c.l.b16 %v410
    %v729 = vunpack.c.h.b16 %v410
    %v730 = vunpack.c.l.b16 %v411
    %v731 = vunpack.c.h.b16 %v411
    %v732 = vunpack.c.l.b16 %v412
    %v733 = vunpack.c.h.b16 %v412
    %v734 = vunpack.c.l.b16 %v413
    %v735 = vunpack.c.h.b16 %v413
    %v736 = vunpack.c.l.b16 %v414
    %v737 = vunpack.c.h.b16 %v414
    %v738 = vunpack.c.l.b16 %v415
    %v739 = vunpack.c.h.b16 %v415
    %v740 = vunpack.c.l.b16 %v416
    %v741 = vunpack.c.h.b16 %v416
    %v742 = vunpack.c.l.b16 %v417
    %v743 = vunpack.c.h.b16 %v417
    %v744 = vunpack.c.l.b16 %v418
    %v745 = vunpack.c.h.b16 %v418
    %v746 = vunpack.c.l.b16 %v419
    %v747 = vunpack.c.h.b16 %v419
    %v748 = vunpack.c.l.b16 %v420
    %v749 = vunpack.c.h.b16 %v420
    %v750 = vunpack.c.l.b16 %v421
    %v751 = vunpack.c.h.b16 %v421
    %v752 = vunpack.c.l.b16 %v422
    %v753 = vunpack.c.h.b16 %v422
    %v754 = vunpack.c.l.b16 %v423
    %v755 = vunpack.c.h.b16 %v423
    %v756 = vunpack.c.l.b16 %v424
    %v757 = vunpack.c.h.b16 %v424
    %v758 = vunpack.c.l.b16 %v425
    %v759 = vunpack.c.h.b16 %v425
    %v760 = vunpack.c.l.b16 %v426
    %v761 = vunpack.c.h.b16 %v426
    %v762 = vunpack.c.l.b16 %v427
    %v763 = vunpack.c.h.b16 %v427
    %v764 = vunpack.c.l.b16 %v428
    %v765 = vunpack.c.h.b16 %v428
    %v766 = vunpack.c.l.b16 %v429
    %v767 = vunpack.c.h.b16 %v429
    %v768 = vunpack.c.l.b16 %v430
    %v769 = vunpack.c.h.b16 %v430
    %v770 = vunpack.c.l.b16 %v431
    %v771 = vunpack.c.h.b16 %v431
    %v772 = vunpack.c.l.b16 %v432
    %v773 = vunpack.c.h.b16 %v432
    %v774 = vunpack.c.l.b16 %v433
    %v775 = vunpack.c.h.b16 %v433
    %v776 = vunpack.c.l.b16 %v434
    %v777 = vunpack.c.h.b16 %v434
    %v778 = vunpack.c.l.b16 %v435
    %v779 = vunpack.c.h.b16 %v435
    %v780 = vunpack.c.l.b16 %v436
    %v781 = vunpack.c.h.b16 %v436
    %v782 = vunpack.c.l.b16 %v437
    %v783 = vunpack.c.h.b16 %v437
    %v784 = vunpack.c.l.b16 %v438
    %v785 = vunpack.c.h.b16 %v438
    %v786 = vunpack.c.l.b16 %v439
    %v787 = vunpack.c.h.b16 %v439
    %v788 = vunpack.c.l.b16 %v440
    %v789 = vunpack.c.h.b16 %v440
    %v790 = vunpack.c.l.b16 %v441
    %v791 = vunpack.c.h.b16 %v441
    %v792 = vunpack.c.l.b16 %v442
    %v793 = vunpack.c.h.b16 %v442
    %v794 = vunpack.c.l.b16 %v443
    %v795 = vunpack.c.h.b16 %v443
    %v796 = vunpack.c.l.b16 %v444
    %v797 = vunpack.c.h.b16 %v444
    %v798 = vunpack.c.l.b16 %v445
    %v799 = vunpack.c.h.b16 %v445
    %v800 = vunpack.c.l.b16 %v446
    %v801 = vunpack.c.h.b16 %v446
    %v802 = vunpack.c.l.b16 %v447
    %v803 = vunpack.c.h.b16 %v447
    %v804 = vunpack.c.l.b16 %v448
    %v805 = vunpack.c.h.b16 %v448
    %v806 = vunpack.c.l.b16 %v449
    %v807 = vunpack.c.h.b16 %v449
    %v808 = vunpack.c.l.b16 %v450
    %v809 = vunpack.c.h.b16 %v450
    %v810 = vunpack.c.l.b16 %v451
    %v811 = vunpack.c.h.b16 %v451
    %v812 = vunpack.c.l.b16 %v452
    %v813 = vunpack.c.h.b16 %v452
    %v814 = vunpack.c.l.b16 %v453
    %v815 = vunpack.c.h.b16 %v453
    %v816 = vunpack.c.l.b16 %v454
    %v817 = vunpack.c.h.b16 %v454
    %v818 = vunpack.c.l.b16 %v455
    %v819 = vunpack.c.h.b16 %v455
    %v820 = vunpack.c.l.b16 %v456
    %v821 = vunpack.c.h.b16 %v456
    %v822 = vunpack.c.l.b16 %v457
    %v823 = vunpack.c.h.b16 %v457
    %v824 = vunpack.c.l.b16 %v458
    %v825 = vunpack.c.h.b16 %v458
    %v826 = vunpack.c.l.b16 %v459
    %v827 = vunpack.c.h.b16 %v459
    %v828 = vunpack.c.l.b16 %v460
    %v829 = vunpack.c.h.b16 %v460
    %v830 = vunpack.c.l.b16 %v461
    %v831 = vunpack.c.h.b16 %v461
    %v832 = vunpack.c.l.b16 %v462
    %v833 = vunpack.c.h.b16 %v462
    %v834 = vunpack.c.l.b16 %v463
    %v835 = vunpack.c.h.b16 %v463
    %v836 = vunpack.c.l.b16 %v464
    %v837 = vunpack.c.h.b16 %v464
    %v838 = vunpack.c.l.b16 %v465
    %v839 = vunpack.c.h.b16 %v465
    %v840 = vunpack.c.l.b16 %v466
    %v841 = vunpack.c.h.b16 %v466
    %v842 = vunpack.c.l.b16 %v467
    %v843 = vunpack.c.h.b16 %v467
    %v844 = vunpack.c.l.b16 %v468
    %v845 = vunpack.c.h.b16 %v468
    %v846 = vunpack.c.l.b16 %v469
    %v847 = vunpack.c.h.b16 %v469
    %v848 = vunpack.c.l.b16 %v470
    %v849 = vunpack.c.h.b16 %v470
    %v850 = vunpack.c.l.b16 %v471
    %v851 = vunpack.c.h.b16 %v471
    %v852 = vunpack.c.l.b16 %v472
    %v853 = vunpack.c.h.b16 %v472
    %v854 = vunpack.c.l.b16 %v473
    %v855 = vunpack.c.h.b16 %v473
    %v856 = vunpack.c.l.b16 %v474
    %v857 = vunpack.c.h.b16 %v474
    %v858 = vunpack.c.l.b16 %v475
    %v859 = vunpack.c.h.b16 %v475
    %v860 = vpack.c.b16 %v608, %v604
    %v861 = vpack.c.b16 %v609, %v605
    %v862 = vpack.c.b16 %v610, %v606
    %v863 = vpack.c.b16 %v611, %v607
    %v864 = vpack.c.b16 %v616, %v612
    %v865 = vpack.c.b16 %v617, %v613
    %v866 = vpack.c.b16 %v618, %v614
    %v867 = vpack.c.b16 %v619, %v615
    %v868 = vpack.c.b16 %v624, %v620
    %v869 = vpack.c.b16 %v625, %v621
    %v870 = vpack.c.b16 %v626, %v622
    %v871 = vpack.c.b16 %v627, %v623
    %v872 = vpack.c.b16 %v632, %v628
    %v873 = vpack.c.b16 %v633, %v629
    %v874 = vpack.c.b16 %v634, %v630
    %v875 = vpack.c.b16 %v635, %v631
    %v876 = vpack.c.b16 %v640, %v636
    %v877 = vpack.c.b16 %v641, %v637
    %v878 = vpack.c.b16 %v642, %v638
    %v879 = vpack.c.b16 %v643, %v639
    %v880 = vpack.c.b16 %v648, %v644
    %v881 = vpack.c.b16 %v649, %v645
    %v882 = vpack.c.b16 %v650, %v646
    %v883 = vpack.c.b16 %v651, %v647
    %v884 = vpack.c.b16 %v656, %v652
    %v885 = vpack.c.b16 %v657, %v653
    %v886 = vpack.c.b16 %v658, %v654
    %v887 = vpack.c.b16 %v659, %v655
    %v888 = vpack.c.b16 %v664, %v660
    %v889 = vpack.c.b16 %v665, %v661
    %v890 = vpack.c.b16 %v666, %v662
    %v891 = vpack.c.b16 %v667, %v663
    %v892 = vpack.c.b16 %v672, %v668
    %v893 = vpack.c.b16 %v673, %v669
    %v894 = vpack.c.b16 %v674, %v670
    %v895 = vpack.c.b16 %v675, %v671
    %v896 = vpack.c.b16 %v680, %v676
    %v897 = vpack.c.b16 %v681, %v677
    %v898 = vpack.c.b16 %v682, %v678
    %v899 = vpack.c.b16 %v683, %v679
    %v900 = vpack.c.b16 %v688, %v684
    %v901 = vpack.c.b16 %v689, %v685
    %v902 = vpack.c.b16 %v690, %v686
    %v903 = vpack.c.b16 %v691, %v687
    %v904 = vpack.c.b16 %v696, %v692
    %v905 = vpack.c.b16 %v697, %v693
    %v906 = vpack.c.b16 %v698, %v694
    %v907 = vpack.c.b16 %v699, %v695
    %v908 = vpack.c.b16 %v704, %v700
    %v909 = vpack.c.b16 %v705, %v701
    %v910 = vpack.c.b16 %v706, %v702
    %v911 = vpack.c.b16 %v707, %v703
    %v912 = vpack.c.b16 %v712, %v708
    %v913 = vpack.c.b16 %v713, %v709
    %v914 = vpack.c.b16 %v714, %v710
    %v915 = vpack.c.b16 %v715, %v711
    %v916 = vpack.c.b16 %v720, %v716
    %v917 = vpack.c.b16 %v721, %v717
    %v918 = vpack.c.b16 %v722, %v718
    %v919 = vpack.c.b16 %v723, %v719
    %v920 = vpack.c.b16 %v728, %v724
    %v921 = vpack.c.b16 %v729, %v725
    %v922 = vpack.c.b16 %v730, %v726
    %v923 = vpack.c.b16 %v731, %v727
    %v924 = vpack.c.b16 %v736, %v732
    %v925 = vpack.c.b16 %v737, %v733
    %v926 = vpack.c.b16 %v738, %v734
    %v927 = vpack.c.b16 %v739, %v735
    %v928 = vpack.c.b16 %v744, %v740
    %v929 = vpack.c.b16 %v745, %v741
    %v930 = vpack.c.b16 %v746, %v742
    %v931 = vpack.c.b16 %v747, %v743
    %v932 = vpack.c.b16 %v752, %v748
    %v933 = vpack.c.b16 %v753, %v749
    %v934 = vpack.c.b16 %v754, %v750
    %v935 = vpack.c.b16 %v755, %v751
    %v936 = vpack.c.b16 %v760, %v756
    %v937 = vpack.c.b16 %v761, %v757
    %v938 = vpack.c.b16 %v762, %v758
    %v939 = vpack.c.b16 %v763, %v759
    %v940 = vpack.c.b16 %v768, %v764
    %v941 = vpack.c.b16 %v769, %v765
    %v942 = vpack.c.b16 %v770, %v766
    %v943 = vpack.c.b16 %v771, %v767
    %v944 = vpack.c.b16 %v776, %v772
    %v945 = vpack.c.b16 %v777, %v773
    %v946 = vpack.c.b16 %v778, %v774
    %v947 = vpack.c.b16 %v779, %v775
    %v948 = vpack.c.b16 %v784, %v780
    %v949 = vpack.c.b16 %v785, %v781
    %v950 = vpack.c.b16 %v786, %v782
    %v951 = vpack.c.b16 %v787, %v783
    %v952 = vpack.c.b16 %v792, %v788
    %v953 = vpack.c.b16 %v793, %v789
    %v954 = vpack.c.b16 %v794, %v790
    %v955 = vpack.c.b16 %v795, %v791
    %v956 = vpack.c.b16 %v800, %v796
    %v957 = vpack.c.b16 %v801, %v797
    %v958 = vpack.c.b16 %v802, %v798
    %v959 = vpack.c.b16 %v803, %v799
    %v960 = vpack.c.b16 %v808, %v804
    %v961 = vpack.c.b16 %v809, %v805
    %v962 = vpack.c.b16 %v810, %v806
    %v963 = vpack.c.b16 %v811, %v807
    %v964 = vpack.c.b16 %v816, %v812
    %v965 = vpack.c.b16 %v817, %v813
    %v966 = vpack.c.b16 %v818, %v814
    %v967 = vpack.c.b16 %v819, %v815
    %v968 = vpack.c.b16 %v824, %v820
    %v969 = vpack.c.b16 %v825, %v821
    %v970 = vpack.c.b16 %v826, %v822
    %v971 = vpack.c.b16 %v827, %v823
    %v972 = vpack.c.b16 %v832, %v828
    %v973 = vpack.c.b16 %v833, %v829
    %v974 = vpack.c.b16 %v834, %v830
    %v975 = vpack.c.b16 %v835, %v831
    %v976 = vpack.c.b16 %v840, %v836
    %v977 = vpack.c.b16 %v841, %v837
    %v978 = vpack.c.b16 %v842, %v838
    %v979 = vpack.c.b16 %v843, %v839
    %v980 = vpack.c.b16 %v848, %v844
    %v981 = vpack.c.b16 %v849, %v845
    %v982 = vpack.c.b16 %v850, %v846
    %v983 = vpack.c.b16 %v851, %v847
    %v984 = vpack.c.b16 %v856, %v852
    %v985 = vpack.c.b16 %v857, %v853
    %v986 = vpack.c.b16 %v858, %v854
    %v987 = vpack.c.b16 %v859, %v855
    %1116 = vmatprep.subr.bf16.mxu0 %v861
    %1117 = vmatpush1.bf16.msra.mxu0 %v860
    %1118 = vmatprep.subr.bf16.mxu0 %v865
    %1119 = vmatpush1.bf16.msra.mxu0 %v864
    %1120 = vmatprep.subr.bf16.mxu0 %v869
    %1121 = vmatpush1.bf16.msra.mxu0 %v868
    %1122 = vmatprep.subr.bf16.mxu0 %v873
    %1123 = vmatpush1.bf16.msra.mxu0 %v872
    %1124 = vmatprep.subr.bf16.mxu0 %v877
    %1125 = vmatpush1.bf16.msra.mxu0 %v876
    %1126 = vmatprep.subr.bf16.mxu0 %v881
    %1127 = vmatpush1.bf16.msra.mxu0 %v880
    %1128 = vmatprep.subr.bf16.mxu0 %v885
    %1129 = vmatpush1.bf16.msra.mxu0 %v884
    %1130 = vmatprep.subr.bf16.mxu0 %v889
    %1131 = vmatpush1.bf16.msra.mxu0 %v888
    %1132 = vmatprep.subr.bf16.mxu0 %v893
    %1133 = vmatpush1.bf16.msra.mxu0 %v892
    %1134 = vmatprep.subr.bf16.mxu0 %v897
    %1135 = vmatpush1.bf16.msra.mxu0 %v896
    %1136 = vmatprep.subr.bf16.mxu0 %v901
    %1137 = vmatpush1.bf16.msra.mxu0 %v900
    %1138 = vmatprep.subr.bf16.mxu0 %v905
    %1139 = vmatpush1.bf16.msra.mxu0 %v904
    %1140 = vmatprep.subr.bf16.mxu0 %v909
    %1141 = vmatpush1.bf16.msra.mxu0 %v908
    %1142 = vmatprep.subr.bf16.mxu0 %v913
    %1143 = vmatpush1.bf16.msra.mxu0 %v912
    %1144 = vmatprep.subr.bf16.mxu0 %v917
    %1145 = vmatpush1.bf16.msra.mxu0 %v916
    %1146 = vmatprep.subr.bf16.mxu0 %v921
    %1147 = vmatpush1.bf16.msra.mxu0 %v920
    %1148 = vmatprep.mubr.bf16.mxu0 %v345
    %1149 = vmatmul.mubr.bf16.gmra.mrb[0].mxu0 %v344
    %v1150 = vpop.f32.mrb[0].mxu0
    %v1151 = vadd.f32 %v340, %v1150
    %v1152 = vpop.f32.mrb[0].mxu0
    %v1153 = vadd.f32 %v341, %v1152
    %v1154 = vpop.f32.mrb[0].mxu0
    %v1155 = vpop.f32.mrb[0].mxu0
    %1156 = vdwg.mxu0
    %1157 = vmatprep.subr.bf16.mxu0 %v925
    %1158 = vmatpush1.bf16.msra.mxu0 %v924
    %1159 = vmatprep.subr.bf16.mxu0 %v929
    %1160 = vmatpush1.bf16.msra.mxu0 %v928
    %1161 = vmatprep.subr.bf16.mxu0 %v933
    %1162 = vmatpush1.bf16.msra.mxu0 %v932
    %1163 = vmatprep.subr.bf16.mxu0 %v937
    %1164 = vmatpush1.bf16.msra.mxu0 %v936
    %1165 = vmatprep.subr.bf16.mxu0 %v941
    %1166 = vmatpush1.bf16.msra.mxu0 %v940
    %1167 = vmatprep.subr.bf16.mxu0 %v945
    %1168 = vmatpush1.bf16.msra.mxu0 %v944
    %1169 = vmatprep.subr.bf16.mxu0 %v949
    %1170 = vmatpush1.bf16.msra.mxu0 %v948
    %1171 = vmatprep.subr.bf16.mxu0 %v953
    %1172 = vmatpush1.bf16.msra.mxu0 %v952
    %1173 = vmatprep.subr.bf16.mxu0 %v957
    %1174 = vmatpush1.bf16.msra.mxu0 %v956
    %1175 = vmatprep.subr.bf16.mxu0 %v961
    %1176 = vmatpush1.bf16.msra.mxu0 %v960
    %1177 = vmatprep.subr.bf16.mxu0 %v965
    %1178 = vmatpush1.bf16.msra.mxu0 %v964
    %1179 = vmatprep.subr.bf16.mxu0 %v969
    %1180 = vmatpush1.bf16.msra.mxu0 %v968
    %1181 = vmatprep.subr.bf16.mxu0 %v973
    %1182 = vmatpush1.bf16.msra.mxu0 %v972
    %1183 = vmatprep.subr.bf16.mxu0 %v977
    %1184 = vmatpush1.bf16.msra.mxu0 %v976
    %1185 = vmatprep.subr.bf16.mxu0 %v981
    %1186 = vmatpush1.bf16.msra.mxu0 %v980
    %1187 = vmatprep.subr.bf16.mxu0 %v985
    %1188 = vmatpush1.bf16.msra.mxu0 %v984
    %1189 = vmatprep.mubr.bf16.mxu0 %v347
    %1190 = vmatmul.mubr.bf16.gmra.mrb[0].mxu0 %v346
    %v1191 = vpop.f32.mrb[0].mxu0
    %v1192 = vadd.f32 %v1151, %v1191
    %v1193 = vpop.f32.mrb[0].mxu0
    %v1194 = vadd.f32 %v1153, %v1193
    %v1195 = vpop.f32.mrb[0].mxu0
    %v1196 = vpop.f32.mrb[0].mxu0
    %1197 = vdwg.mxu0
    %1198 = vmatprep.subr.bf16.mxu0 %v863
    %1199 = vmatpush1.bf16.msra.mxu0 %v862
    %1200 = vmatprep.subr.bf16.mxu0 %v867
    %1201 = vmatpush1.bf16.msra.mxu0 %v866
    %1202 = vmatprep.subr.bf16.mxu0 %v871
    %1203 = vmatpush1.bf16.msra.mxu0 %v870
    %1204 = vmatprep.subr.bf16.mxu0 %v875
    %1205 = vmatpush1.bf16.msra.mxu0 %v874
    %1206 = vmatprep.subr.bf16.mxu0 %v879
    %1207 = vmatpush1.bf16.msra.mxu0 %v878
    %1208 = vmatprep.subr.bf16.mxu0 %v883
    %1209 = vmatpush1.bf16.msra.mxu0 %v882
    %1210 = vmatprep.subr.bf16.mxu0 %v887
    %1211 = vmatpush1.bf16.msra.mxu0 %v886
    %1212 = vmatprep.subr.bf16.mxu0 %v891
    %1213 = vmatpush1.bf16.msra.mxu0 %v890
    %1214 = vmatprep.subr.bf16.mxu0 %v895
    %1215 = vmatpush1.bf16.msra.mxu0 %v894
    %1216 = vmatprep.subr.bf16.mxu0 %v899
    %1217 = vmatpush1.bf16.msra.mxu0 %v898
    %1218 = vmatprep.subr.bf16.mxu0 %v903
    %1219 = vmatpush1.bf16.msra.mxu0 %v902
    %1220 = vmatprep.subr.bf16.mxu0 %v907
    %1221 = vmatpush1.bf16.msra.mxu0 %v906
    %1222 = vmatprep.subr.bf16.mxu0 %v911
    %1223 = vmatpush1.bf16.msra.mxu0 %v910
    %1224 = vmatprep.subr.bf16.mxu0 %v915
    %1225 = vmatpush1.bf16.msra.mxu0 %v914
    %1226 = vmatprep.subr.bf16.mxu0 %v919
    %1227 = vmatpush1.bf16.msra.mxu0 %v918
    %1228 = vmatprep.subr.bf16.mxu0 %v923
    %1229 = vmatpush1.bf16.msra.mxu0 %v922
    %1230 = vmatprep.mubr.bf16.mxu0 %v345
    %1231 = vmatmul.mubr.bf16.gmra.mrb[0].mxu0 %v344
    %v1232 = vpop.f32.mrb[0].mxu0
    %v1233 = vadd.f32 %v342, %v1232
    %v1234 = vpop.f32.mrb[0].mxu0
    %v1235 = vadd.f32 %v343, %v1234
    %v1236 = vpop.f32.mrb[0].mxu0
    %v1237 = vpop.f32.mrb[0].mxu0
    %1238 = vdwg.mxu0
    %1239 = vmatprep.subr.bf16.mxu0 %v927
    %1240 = vmatpush1.bf16.msra.mxu0 %v926
    %1241 = vmatprep.subr.bf16.mxu0 %v931
    %1242 = vmatpush1.bf16.msra.mxu0 %v930
    %1243 = vmatprep.subr.bf16.mxu0 %v935
    %1244 = vmatpush1.bf16.msra.mxu0 %v934
    %1245 = vmatprep.subr.bf16.mxu0 %v939
    %1246 = vmatpush1.bf16.msra.mxu0 %v938
    %1247 = vmatprep.subr.bf16.mxu0 %v943
    %1248 = vmatpush1.bf16.msra.mxu0 %v942
    %1249 = vmatprep.subr.bf16.mxu0 %v947
    %1250 = vmatpush1.bf16.msra.mxu0 %v946
    %1251 = vmatprep.subr.bf16.mxu0 %v951
    %1252 = vmatpush1.bf16.msra.mxu0 %v950
    %1253 = vmatprep.subr.bf16.mxu0 %v955
    %1254 = vmatpush1.bf16.msra.mxu0 %v954
    %1255 = vmatprep.subr.bf16.mxu0 %v959
    %1256 = vmatpush1.bf16.msra.mxu0 %v958
    %1257 = vmatprep.subr.bf16.mxu0 %v963
    %1258 = vmatpush1.bf16.msra.mxu0 %v962
    %1259 = vmatprep.subr.bf16.mxu0 %v967
    %1260 = vmatpush1.bf16.msra.mxu0 %v966
    %1261 = vmatprep.subr.bf16.mxu0 %v971
    %1262 = vmatpush1.bf16.msra.mxu0 %v970
    %1263 = vmatprep.subr.bf16.mxu0 %v975
    %1264 = vmatpush1.bf16.msra.mxu0 %v974
    %1265 = vmatprep.subr.bf16.mxu0 %v979
    %1266 = vmatpush1.bf16.msra.mxu0 %v978
    %1267 = vmatprep.subr.bf16.mxu0 %v983
    %1268 = vmatpush1.bf16.msra.mxu0 %v982
    %1269 = vmatprep.subr.bf16.mxu0 %v987
    %1270 = vmatpush1.bf16.msra.mxu0 %v986
    %1271 = vmatprep.mubr.bf16.mxu0 %v347
    %1272 = vmatmul.mubr.bf16.gmra.mrb[0].mxu0 %v346
    %v1273 = vpop.f32.mrb[0].mxu0
    %v1274 = vadd.f32 %v1233, %v1273
    %v1275 = vpop.f32.mrb[0].mxu0
    %v1276 = vadd.f32 %v1235, %v1275
    %v1277 = vpop.f32.mrb[0].mxu0
    %v1278 = vpop.f32.mrb[0].mxu0
    %1279 = vdwg.mxu0
    %v1280 = vld [vmem:[%s5] sm:$0xf]
    %v1282 = vlaneseq
    %v1283 = vshrl.u32 %v1282, 7
    %v1284 = vsub.s32 0, %v1283
    %v1285 = vrot.slane %v1280, %v1284
    %v1286 = vlaneseq
    %v1287 = vshrl.u32 %v1286, 7
    %v1288 = vsub.s32 1, %v1287
    %v1289 = vrot.slane %v1280, %v1288
    %v1290 = vlaneseq
    %v1291 = vshrl.u32 %v1290, 7
    %v1292 = vsub.s32 2, %v1291
    %v1293 = vrot.slane %v1280, %v1292
    %v1294 = vlaneseq
    %v1295 = vshrl.u32 %v1294, 7
    %v1296 = vsub.s32 3, %v1295
    %v1297 = vrot.slane %v1280, %v1296
    %v1302 = vadd.f32 %v1192, %v1285
    %v1303 = vadd.f32 %v1194, %v1289
    %v1304 = vadd.f32 %v1274, %v1293
    %v1305 = vadd.f32 %v1276, %v1297
    %v1306 = vmax.f32 %v1302, 0.0
    %v1307 = vmax.f32 %v1303, 0.0
    %v1308 = vmax.f32 %v1304, 0.0
    %v1309 = vmax.f32 %v1305, 0.0
    %v1310 = vpack.c.bf16 %v1306, %v1306
    %v1311 = vpack.c.bf16 %v1307, %v1307
    %v1312 = vpack.c.bf16 %v1308, %v1308
    %v1313 = vpack.c.bf16 %v1309, %v1309
    %v1314 = vld [vmem:[#allocation8] sm:$0xff]
    %v1315 = vld [vmem:[#allocation8 + $0x8] sm:$0xff]
    %v1316 = vld [vmem:[#allocation8 + $0x10] sm:$0xff]
    %v1317 = vld [vmem:[#allocation8 + $0x18] sm:$0xff]
    %v1318 = vld [vmem:[#allocation8 + $0x20] sm:$0xff]
    %v1319 = vld [vmem:[#allocation8 + $0x28] sm:$0xff]
    %v1320 = vld [vmem:[#allocation8 + $0x30] sm:$0xff]
    %v1321 = vld [vmem:[#allocation8 + $0x38] sm:$0xff]
    %v1322 = vld [vmem:[#allocation8 + $0x40] sm:$0xff]
    %v1323 = vld [vmem:[#allocation8 + $0x48] sm:$0xff]
    %v1324 = vld [vmem:[#allocation8 + $0x50] sm:$0xff]
    %v1325 = vld [vmem:[#allocation8 + $0x58] sm:$0xff]
    %v1326 = vld [vmem:[#allocation8 + $0x60] sm:$0xff]
    %v1327 = vld [vmem:[#allocation8 + $0x68] sm:$0xff]
    %v1328 = vld [vmem:[#allocation8 + $0x70] sm:$0xff]
    %v1329 = vld [vmem:[#allocation8 + $0x78] sm:$0xff]
    %v1330 = vld [vmem:[#allocation8 + $0x80] sm:$0xff]
    %v1331 = vld [vmem:[#allocation8 + $0x88] sm:$0xff]
    %v1332 = vld [vmem:[#allocation8 + $0x90] sm:$0xff]
    %v1333 = vld [vmem:[#allocation8 + $0x98] sm:$0xff]
    %v1334 = vld [vmem:[#allocation8 + $0xa0] sm:$0xff]
    %v1335 = vld [vmem:[#allocation8 + $0xa8] sm:$0xff]
    %v1336 = vld [vmem:[#allocation8 + $0xb0] sm:$0xff]
    %v1337 = vld [vmem:[#allocation8 + $0xb8] sm:$0xff]
    %v1338 = vld [vmem:[#allocation8 + $0xc0] sm:$0xff]
    %v1339 = vld [vmem:[#allocation8 + $0xc8] sm:$0xff]
    %v1340 = vld [vmem:[#allocation8 + $0xd0] sm:$0xff]
    %v1341 = vld [vmem:[#allocation8 + $0xd8] sm:$0xff]
    %v1342 = vld [vmem:[#allocation8 + $0xe0] sm:$0xff]
    %v1343 = vld [vmem:[#allocation8 + $0xe8] sm:$0xff]
    %v1344 = vld [vmem:[#allocation8 + $0xf0] sm:$0xff]
    %v1345 = vld [vmem:[#allocation8 + $0xf8] sm:$0xff]
    %v1346 = vld [vmem:[#allocation8 + $0x100] sm:$0xff]
    %v1347 = vld [vmem:[#allocation8 + $0x108] sm:$0xff]
    %v1348 = vld [vmem:[#allocation8 + $0x110] sm:$0xff]
    %v1349 = vld [vmem:[#allocation8 + $0x118] sm:$0xff]
    %v1350 = vld [vmem:[#allocation8 + $0x120] sm:$0xff]
    %v1351 = vld [vmem:[#allocation8 + $0x128] sm:$0xff]
    %v1352 = vld [vmem:[#allocation8 + $0x130] sm:$0xff]
    %v1353 = vld [vmem:[#allocation8 + $0x138] sm:$0xff]
    %v1354 = vld [vmem:[#allocation8 + $0x140] sm:$0xff]
    %v1355 = vld [vmem:[#allocation8 + $0x148] sm:$0xff]
    %v1356 = vld [vmem:[#allocation8 + $0x150] sm:$0xff]
    %v1357 = vld [vmem:[#allocation8 + $0x158] sm:$0xff]
    %v1358 = vld [vmem:[#allocation8 + $0x160] sm:$0xff]
    %v1359 = vld [vmem:[#allocation8 + $0x168] sm:$0xff]
    %v1360 = vld [vmem:[#allocation8 + $0x170] sm:$0xff]
    %v1361 = vld [vmem:[#allocation8 + $0x178] sm:$0xff]
    %v1362 = vld [vmem:[#allocation8 + $0x180] sm:$0xff]
    %v1363 = vld [vmem:[#allocation8 + $0x188] sm:$0xff]
    %v1364 = vld [vmem:[#allocation8 + $0x190] sm:$0xff]
    %v1365 = vld [vmem:[#allocation8 + $0x198] sm:$0xff]
    %v1366 = vld [vmem:[#allocation8 + $0x1a0] sm:$0xff]
    %v1367 = vld [vmem:[#allocation8 + $0x1a8] sm:$0xff]
    %v1368 = vld [vmem:[#allocation8 + $0x1b0] sm:$0xff]
    %v1369 = vld [vmem:[#allocation8 + $0x1b8] sm:$0xff]
    %v1370 = vld [vmem:[#allocation8 + $0x1c0] sm:$0xff]
    %v1371 = vld [vmem:[#allocation8 + $0x1c8] sm:$0xff]
    %v1372 = vld [vmem:[#allocation8 + $0x1d0] sm:$0xff]
    %v1373 = vld [vmem:[#allocation8 + $0x1d8] sm:$0xff]
    %v1374 = vld [vmem:[#allocation8 + $0x1e0] sm:$0xff]
    %v1375 = vld [vmem:[#allocation8 + $0x1e8] sm:$0xff]
    %v1376 = vld [vmem:[#allocation8 + $0x1f0] sm:$0xff]
    %v1377 = vld [vmem:[#allocation8 + $0x1f8] sm:$0xff]
    %v1378 = vld [vmem:[#allocation8 + $0x200] sm:$0xff]
    %v1379 = vld [vmem:[#allocation8 + $0x208] sm:$0xff]
    %v1380 = vld [vmem:[#allocation8 + $0x210] sm:$0xff]
    %v1381 = vld [vmem:[#allocation8 + $0x218] sm:$0xff]
    %v1382 = vld [vmem:[#allocation8 + $0x220] sm:$0xff]
    %v1383 = vld [vmem:[#allocation8 + $0x228] sm:$0xff]
    %v1384 = vld [vmem:[#allocation8 + $0x230] sm:$0xff]
    %v1385 = vld [vmem:[#allocation8 + $0x238] sm:$0xff]
    %v1386 = vld [vmem:[#allocation8 + $0x240] sm:$0xff]
    %v1387 = vld [vmem:[#allocation8 + $0x248] sm:$0xff]
    %v1388 = vld [vmem:[#allocation8 + $0x250] sm:$0xff]
    %v1389 = vld [vmem:[#allocation8 + $0x258] sm:$0xff]
    %v1390 = vld [vmem:[#allocation8 + $0x260] sm:$0xff]
    %v1391 = vld [vmem:[#allocation8 + $0x268] sm:$0xff]
    %v1392 = vld [vmem:[#allocation8 + $0x270] sm:$0xff]
    %v1393 = vld [vmem:[#allocation8 + $0x278] sm:$0xff]
    %v1394 = vld [vmem:[#allocation8 + $0x280] sm:$0xff]
    %v1395 = vld [vmem:[#allocation8 + $0x288] sm:$0xff]
    %v1396 = vld [vmem:[#allocation8 + $0x290] sm:$0xff]
    %v1397 = vld [vmem:[#allocation8 + $0x298] sm:$0xff]
    %v1398 = vld [vmem:[#allocation8 + $0x2a0] sm:$0xff]
    %v1399 = vld [vmem:[#allocation8 + $0x2a8] sm:$0xff]
    %v1400 = vld [vmem:[#allocation8 + $0x2b0] sm:$0xff]
    %v1401 = vld [vmem:[#allocation8 + $0x2b8] sm:$0xff]
    %v1402 = vld [vmem:[#allocation8 + $0x2c0] sm:$0xff]
    %v1403 = vld [vmem:[#allocation8 + $0x2c8] sm:$0xff]
    %v1404 = vld [vmem:[#allocation8 + $0x2d0] sm:$0xff]
    %v1405 = vld [vmem:[#allocation8 + $0x2d8] sm:$0xff]
    %v1406 = vld [vmem:[#allocation8 + $0x2e0] sm:$0xff]
    %v1407 = vld [vmem:[#allocation8 + $0x2e8] sm:$0xff]
    %v1408 = vld [vmem:[#allocation8 + $0x2f0] sm:$0xff]
    %v1409 = vld [vmem:[#allocation8 + $0x2f8] sm:$0xff]
    %v1410 = vld [vmem:[#allocation8 + $0x300] sm:$0xff]
    %v1411 = vld [vmem:[#allocation8 + $0x308] sm:$0xff]
    %v1412 = vld [vmem:[#allocation8 + $0x310] sm:$0xff]
    %v1413 = vld [vmem:[#allocation8 + $0x318] sm:$0xff]
    %v1414 = vld [vmem:[#allocation8 + $0x320] sm:$0xff]
    %v1415 = vld [vmem:[#allocation8 + $0x328] sm:$0xff]
    %v1416 = vld [vmem:[#allocation8 + $0x330] sm:$0xff]
    %v1417 = vld [vmem:[#allocation8 + $0x338] sm:$0xff]
    %v1418 = vld [vmem:[#allocation8 + $0x340] sm:$0xff]
    %v1419 = vld [vmem:[#allocation8 + $0x348] sm:$0xff]
    %v1420 = vld [vmem:[#allocation8 + $0x350] sm:$0xff]
    %v1421 = vld [vmem:[#allocation8 + $0x358] sm:$0xff]
    %v1422 = vld [vmem:[#allocation8 + $0x360] sm:$0xff]
    %v1423 = vld [vmem:[#allocation8 + $0x368] sm:$0xff]
    %v1424 = vld [vmem:[#allocation8 + $0x370] sm:$0xff]
    %v1425 = vld [vmem:[#allocation8 + $0x378] sm:$0xff]
    %v1426 = vld [vmem:[#allocation8 + $0x380] sm:$0xff]
    %v1427 = vld [vmem:[#allocation8 + $0x388] sm:$0xff]
    %v1428 = vld [vmem:[#allocation8 + $0x390] sm:$0xff]
    %v1429 = vld [vmem:[#allocation8 + $0x398] sm:$0xff]
    %v1430 = vld [vmem:[#allocation8 + $0x3a0] sm:$0xff]
    %v1431 = vld [vmem:[#allocation8 + $0x3a8] sm:$0xff]
    %v1432 = vld [vmem:[#allocation8 + $0x3b0] sm:$0xff]
    %v1433 = vld [vmem:[#allocation8 + $0x3b8] sm:$0xff]
    %v1434 = vld [vmem:[#allocation8 + $0x3c0] sm:$0xff]
    %v1435 = vld [vmem:[#allocation8 + $0x3c8] sm:$0xff]
    %v1436 = vld [vmem:[#allocation8 + $0x3d0] sm:$0xff]
    %v1437 = vld [vmem:[#allocation8 + $0x3d8] sm:$0xff]
    %v1438 = vld [vmem:[#allocation8 + $0x3e0] sm:$0xff]
    %v1439 = vld [vmem:[#allocation8 + $0x3e8] sm:$0xff]
    %v1440 = vld [vmem:[#allocation8 + $0x3f0] sm:$0xff]
    %v1441 = vld [vmem:[#allocation8 + $0x3f8] sm:$0xff]
    %v1442 = vld [vmem:[%s7] sm:$0xf]
    %v1444 = vlaneseq
    %v1445 = vshrl.u32 %v1444, 7
    %v1446 = vsub.s32 0, %v1445
    %v1447 = vrot.slane %v1442, %v1446
    %v1448 = vlaneseq
    %v1449 = vshrl.u32 %v1448, 7
    %v1450 = vsub.s32 1, %v1449
    %v1451 = vrot.slane %v1442, %v1450
    %v1452 = vlaneseq
    %v1453 = vshrl.u32 %v1452, 7
    %v1454 = vsub.s32 2, %v1453
    %v1455 = vrot.slane %v1442, %v1454
    %v1456 = vlaneseq
    %v1457 = vshrl.u32 %v1456, 7
    %v1458 = vsub.s32 3, %v1457
    %v1459 = vrot.slane %v1442, %v1458
    %v1592 = vunpack.c.l.b16 %v1314
    %v1593 = vunpack.c.h.b16 %v1314
    %v1594 = vunpack.c.l.b16 %v1315
    %v1595 = vunpack.c.h.b16 %v1315
    %v1596 = vunpack.c.l.b16 %v1316
    %v1597 = vunpack.c.h.b16 %v1316
    %v1598 = vunpack.c.l.b16 %v1317
    %v1599 = vunpack.c.h.b16 %v1317
    %v1600 = vunpack.c.l.b16 %v1318
    %v1601 = vunpack.c.h.b16 %v1318
    %v1602 = vunpack.c.l.b16 %v1319
    %v1603 = vunpack.c.h.b16 %v1319
    %v1604 = vunpack.c.l.b16 %v1320
    %v1605 = vunpack.c.h.b16 %v1320
    %v1606 = vunpack.c.l.b16 %v1321
    %v1607 = vunpack.c.h.b16 %v1321
    %v1608 = vunpack.c.l.b16 %v1322
    %v1609 = vunpack.c.h.b16 %v1322
    %v1610 = vunpack.c.l.b16 %v1323
    %v1611 = vunpack.c.h.b16 %v1323
    %v1612 = vunpack.c.l.b16 %v1324
    %v1613 = vunpack.c.h.b16 %v1324
    %v1614 = vunpack.c.l.b16 %v1325
    %v1615 = vunpack.c.h.b16 %v1325
    %v1616 = vunpack.c.l.b16 %v1326
    %v1617 = vunpack.c.h.b16 %v1326
    %v1618 = vunpack.c.l.b16 %v1327
    %v1619 = vunpack.c.h.b16 %v1327
    %v1620 = vunpack.c.l.b16 %v1328
    %v1621 = vunpack.c.h.b16 %v1328
    %v1622 = vunpack.c.l.b16 %v1329
    %v1623 = vunpack.c.h.b16 %v1329
    %v1624 = vunpack.c.l.b16 %v1330
    %v1625 = vunpack.c.h.b16 %v1330
    %v1626 = vunpack.c.l.b16 %v1331
    %v1627 = vunpack.c.h.b16 %v1331
    %v1628 = vunpack.c.l.b16 %v1332
    %v1629 = vunpack.c.h.b16 %v1332
    %v1630 = vunpack.c.l.b16 %v1333
    %v1631 = vunpack.c.h.b16 %v1333
    %v1632 = vunpack.c.l.b16 %v1334
    %v1633 = vunpack.c.h.b16 %v1334
    %v1634 = vunpack.c.l.b16 %v1335
    %v1635 = vunpack.c.h.b16 %v1335
    %v1636 = vunpack.c.l.b16 %v1336
    %v1637 = vunpack.c.h.b16 %v1336
    %v1638 = vunpack.c.l.b16 %v1337
    %v1639 = vunpack.c.h.b16 %v1337
    %v1640 = vunpack.c.l.b16 %v1338
    %v1641 = vunpack.c.h.b16 %v1338
    %v1642 = vunpack.c.l.b16 %v1339
    %v1643 = vunpack.c.h.b16 %v1339
    %v1644 = vunpack.c.l.b16 %v1340
    %v1645 = vunpack.c.h.b16 %v1340
    %v1646 = vunpack.c.l.b16 %v1341
    %v1647 = vunpack.c.h.b16 %v1341
    %v1648 = vunpack.c.l.b16 %v1342
    %v1649 = vunpack.c.h.b16 %v1342
    %v1650 = vunpack.c.l.b16 %v1343
    %v1651 = vunpack.c.h.b16 %v1343
    %v1652 = vunpack.c.l.b16 %v1344
    %v1653 = vunpack.c.h.b16 %v1344
    %v1654 = vunpack.c.l.b16 %v1345
    %v1655 = vunpack.c.h.b16 %v1345
    %v1656 = vunpack.c.l.b16 %v1346
    %v1657 = vunpack.c.h.b16 %v1346
    %v1658 = vunpack.c.l.b16 %v1347
    %v1659 = vunpack.c.h.b16 %v1347
    %v1660 = vunpack.c.l.b16 %v1348
    %v1661 = vunpack.c.h.b16 %v1348
    %v1662 = vunpack.c.l.b16 %v1349
    %v1663 = vunpack.c.h.b16 %v1349
    %v1664 = vunpack.c.l.b16 %v1350
    %v1665 = vunpack.c.h.b16 %v1350
    %v1666 = vunpack.c.l.b16 %v1351
    %v1667 = vunpack.c.h.b16 %v1351
    %v1668 = vunpack.c.l.b16 %v1352
    %v1669 = vunpack.c.h.b16 %v1352
    %v1670 = vunpack.c.l.b16 %v1353
    %v1671 = vunpack.c.h.b16 %v1353
    %v1672 = vunpack.c.l.b16 %v1354
    %v1673 = vunpack.c.h.b16 %v1354
    %v1674 = vunpack.c.l.b16 %v1355
    %v1675 = vunpack.c.h.b16 %v1355
    %v1676 = vunpack.c.l.b16 %v1356
    %v1677 = vunpack.c.h.b16 %v1356
    %v1678 = vunpack.c.l.b16 %v1357
    %v1679 = vunpack.c.h.b16 %v1357
    %v1680 = vunpack.c.l.b16 %v1358
    %v1681 = vunpack.c.h.b16 %v1358
    %v1682 = vunpack.c.l.b16 %v1359
    %v1683 = vunpack.c.h.b16 %v1359
    %v1684 = vunpack.c.l.b16 %v1360
    %v1685 = vunpack.c.h.b16 %v1360
    %v1686 = vunpack.c.l.b16 %v1361
    %v1687 = vunpack.c.h.b16 %v1361
    %v1688 = vunpack.c.l.b16 %v1362
    %v1689 = vunpack.c.h.b16 %v1362
    %v1690 = vunpack.c.l.b16 %v1363
    %v1691 = vunpack.c.h.b16 %v1363
    %v1692 = vunpack.c.l.b16 %v1364
    %v1693 = vunpack.c.h.b16 %v1364
    %v1694 = vunpack.c.l.b16 %v1365
    %v1695 = vunpack.c.h.b16 %v1365
    %v1696 = vunpack.c.l.b16 %v1366
    %v1697 = vunpack.c.h.b16 %v1366
    %v1698 = vunpack.c.l.b16 %v1367
    %v1699 = vunpack.c.h.b16 %v1367
    %v1700 = vunpack.c.l.b16 %v1368
    %v1701 = vunpack.c.h.b16 %v1368
    %v1702 = vunpack.c.l.b16 %v1369
    %v1703 = vunpack.c.h.b16 %v1369
    %v1704 = vunpack.c.l.b16 %v1370
    %v1705 = vunpack.c.h.b16 %v1370
    %v1706 = vunpack.c.l.b16 %v1371
    %v1707 = vunpack.c.h.b16 %v1371
    %v1708 = vunpack.c.l.b16 %v1372
    %v1709 = vunpack.c.h.b16 %v1372
    %v1710 = vunpack.c.l.b16 %v1373
    %v1711 = vunpack.c.h.b16 %v1373
    %v1712 = vunpack.c.l.b16 %v1374
    %v1713 = vunpack.c.h.b16 %v1374
    %v1714 = vunpack.c.l.b16 %v1375
    %v1715 = vunpack.c.h.b16 %v1375
    %v1716 = vunpack.c.l.b16 %v1376
    %v1717 = vunpack.c.h.b16 %v1376
    %v1718 = vunpack.c.l.b16 %v1377
    %v1719 = vunpack.c.h.b16 %v1377
    %v1720 = vunpack.c.l.b16 %v1378
    %v1721 = vunpack.c.h.b16 %v1378
    %v1722 = vunpack.c.l.b16 %v1379
    %v1723 = vunpack.c.h.b16 %v1379
    %v1724 = vunpack.c.l.b16 %v1380
    %v1725 = vunpack.c.h.b16 %v1380
    %v1726 = vunpack.c.l.b16 %v1381
    %v1727 = vunpack.c.h.b16 %v1381
    %v1728 = vunpack.c.l.b16 %v1382
    %v1729 = vunpack.c.h.b16 %v1382
    %v1730 = vunpack.c.l.b16 %v1383
    %v1731 = vunpack.c.h.b16 %v1383
    %v1732 = vunpack.c.l.b16 %v1384
    %v1733 = vunpack.c.h.b16 %v1384
    %v1734 = vunpack.c.l.b16 %v1385
    %v1735 = vunpack.c.h.b16 %v1385
    %v1736 = vunpack.c.l.b16 %v1386
    %v1737 = vunpack.c.h.b16 %v1386
    %v1738 = vunpack.c.l.b16 %v1387
    %v1739 = vunpack.c.h.b16 %v1387
    %v1740 = vunpack.c.l.b16 %v1388
    %v1741 = vunpack.c.h.b16 %v1388
    %v1742 = vunpack.c.l.b16 %v1389
    %v1743 = vunpack.c.h.b16 %v1389
    %v1744 = vunpack.c.l.b16 %v1390
    %v1745 = vunpack.c.h.b16 %v1390
    %v1746 = vunpack.c.l.b16 %v1391
    %v1747 = vunpack.c.h.b16 %v1391
    %v1748 = vunpack.c.l.b16 %v1392
    %v1749 = vunpack.c.h.b16 %v1392
    %v1750 = vunpack.c.l.b16 %v1393
    %v1751 = vunpack.c.h.b16 %v1393
    %v1752 = vunpack.c.l.b16 %v1394
    %v1753 = vunpack.c.h.b16 %v1394
    %v1754 = vunpack.c.l.b16 %v1395
    %v1755 = vunpack.c.h.b16 %v1395
    %v1756 = vunpack.c.l.b16 %v1396
    %v1757 = vunpack.c.h.b16 %v1396
    %v1758 = vunpack.c.l.b16 %v1397
    %v1759 = vunpack.c.h.b16 %v1397
    %v1760 = vunpack.c.l.b16 %v1398
    %v1761 = vunpack.c.h.b16 %v1398
    %v1762 = vunpack.c.l.b16 %v1399
    %v1763 = vunpack.c.h.b16 %v1399
    %v1764 = vunpack.c.l.b16 %v1400
    %v1765 = vunpack.c.h.b16 %v1400
    %v1766 = vunpack.c.l.b16 %v1401
    %v1767 = vunpack.c.h.b16 %v1401
    %v1768 = vunpack.c.l.b16 %v1402
    %v1769 = vunpack.c.h.b16 %v1402
    %v1770 = vunpack.c.l.b16 %v1403
    %v1771 = vunpack.c.h.b16 %v1403
    %v1772 = vunpack.c.l.b16 %v1404
    %v1773 = vunpack.c.h.b16 %v1404
    %v1774 = vunpack.c.l.b16 %v1405
    %v1775 = vunpack.c.h.b16 %v1405
    %v1776 = vunpack.c.l.b16 %v1406
    %v1777 = vunpack.c.h.b16 %v1406
    %v1778 = vunpack.c.l.b16 %v1407
    %v1779 = vunpack.c.h.b16 %v1407
    %v1780 = vunpack.c.l.b16 %v1408
    %v1781 = vunpack.c.h.b16 %v1408
    %v1782 = vunpack.c.l.b16 %v1409
    %v1783 = vunpack.c.h.b16 %v1409
    %v1784 = vunpack.c.l.b16 %v1410
    %v1785 = vunpack.c.h.b16 %v1410
    %v1786 = vunpack.c.l.b16 %v1411
    %v1787 = vunpack.c.h.b16 %v1411
    %v1788 = vunpack.c.l.b16 %v1412
    %v1789 = vunpack.c.h.b16 %v1412
    %v1790 = vunpack.c.l.b16 %v1413
    %v1791 = vunpack.c.h.b16 %v1413
    %v1792 = vunpack.c.l.b16 %v1414
    %v1793 = vunpack.c.h.b16 %v1414
    %v1794 = vunpack.c.l.b16 %v1415
    %v1795 = vunpack.c.h.b16 %v1415
    %v1796 = vunpack.c.l.b16 %v1416
    %v1797 = vunpack.c.h.b16 %v1416
    %v1798 = vunpack.c.l.b16 %v1417
    %v1799 = vunpack.c.h.b16 %v1417
    %v1800 = vunpack.c.l.b16 %v1418
    %v1801 = vunpack.c.h.b16 %v1418
    %v1802 = vunpack.c.l.b16 %v1419
    %v1803 = vunpack.c.h.b16 %v1419
    %v1804 = vunpack.c.l.b16 %v1420
    %v1805 = vunpack.c.h.b16 %v1420
    %v1806 = vunpack.c.l.b16 %v1421
    %v1807 = vunpack.c.h.b16 %v1421
    %v1808 = vunpack.c.l.b16 %v1422
    %v1809 = vunpack.c.h.b16 %v1422
    %v1810 = vunpack.c.l.b16 %v1423
    %v1811 = vunpack.c.h.b16 %v1423
    %v1812 = vunpack.c.l.b16 %v1424
    %v1813 = vunpack.c.h.b16 %v1424
    %v1814 = vunpack.c.l.b16 %v1425
    %v1815 = vunpack.c.h.b16 %v1425
    %v1816 = vunpack.c.l.b16 %v1426
    %v1817 = vunpack.c.h.b16 %v1426
    %v1818 = vunpack.c.l.b16 %v1427
    %v1819 = vunpack.c.h.b16 %v1427
    %v1820 = vunpack.c.l.b16 %v1428
    %v1821 = vunpack.c.h.b16 %v1428
    %v1822 = vunpack.c.l.b16 %v1429
    %v1823 = vunpack.c.h.b16 %v1429
    %v1824 = vunpack.c.l.b16 %v1430
    %v1825 = vunpack.c.h.b16 %v1430
    %v1826 = vunpack.c.l.b16 %v1431
    %v1827 = vunpack.c.h.b16 %v1431
    %v1828 = vunpack.c.l.b16 %v1432
    %v1829 = vunpack.c.h.b16 %v1432
    %v1830 = vunpack.c.l.b16 %v1433
    %v1831 = vunpack.c.h.b16 %v1433
    %v1832 = vunpack.c.l.b16 %v1434
    %v1833 = vunpack.c.h.b16 %v1434
    %v1834 = vunpack.c.l.b16 %v1435
    %v1835 = vunpack.c.h.b16 %v1435
    %v1836 = vunpack.c.l.b16 %v1436
    %v1837 = vunpack.c.h.b16 %v1436
    %v1838 = vunpack.c.l.b16 %v1437
    %v1839 = vunpack.c.h.b16 %v1437
    %v1840 = vunpack.c.l.b16 %v1438
    %v1841 = vunpack.c.h.b16 %v1438
    %v1842 = vunpack.c.l.b16 %v1439
    %v1843 = vunpack.c.h.b16 %v1439
    %v1844 = vunpack.c.l.b16 %v1440
    %v1845 = vunpack.c.h.b16 %v1440
    %v1846 = vunpack.c.l.b16 %v1441
    %v1847 = vunpack.c.h.b16 %v1441
    %v1848 = vpack.c.b16 %v1596, %v1592
    %v1849 = vpack.c.b16 %v1597, %v1593
    %v1850 = vpack.c.b16 %v1598, %v1594
    %v1851 = vpack.c.b16 %v1599, %v1595
    %v1852 = vpack.c.b16 %v1604, %v1600
    %v1853 = vpack.c.b16 %v1605, %v1601
    %v1854 = vpack.c.b16 %v1606, %v1602
    %v1855 = vpack.c.b16 %v1607, %v1603
    %v1856 = vpack.c.b16 %v1612, %v1608
    %v1857 = vpack.c.b16 %v1613, %v1609
    %v1858 = vpack.c.b16 %v1614, %v1610
    %v1859 = vpack.c.b16 %v1615, %v1611
    %v1860 = vpack.c.b16 %v1620, %v1616
    %v1861 = vpack.c.b16 %v1621, %v1617
    %v1862 = vpack.c.b16 %v1622, %v1618
    %v1863 = vpack.c.b16 %v1623, %v1619
    %v1864 = vpack.c.b16 %v1628, %v1624
    %v1865 = vpack.c.b16 %v1629, %v1625
    %v1866 = vpack.c.b16 %v1630, %v1626
    %v1867 = vpack.c.b16 %v1631, %v1627
    %v1868 = vpack.c.b16 %v1636, %v1632
    %v1869 = vpack.c.b16 %v1637, %v1633
    %v1870 = vpack.c.b16 %v1638, %v1634
    %v1871 = vpack.c.b16 %v1639, %v1635
    %v1872 = vpack.c.b16 %v1644, %v1640
    %v1873 = vpack.c.b16 %v1645, %v1641
    %v1874 = vpack.c.b16 %v1646, %v1642
    %v1875 = vpack.c.b16 %v1647, %v1643
    %v1876 = vpack.c.b16 %v1652, %v1648
    %v1877 = vpack.c.b16 %v1653, %v1649
    %v1878 = vpack.c.b16 %v1654, %v1650
    %v1879 = vpack.c.b16 %v1655, %v1651
    %v1880 = vpack.c.b16 %v1660, %v1656
    %v1881 = vpack.c.b16 %v1661, %v1657
    %v1882 = vpack.c.b16 %v1662, %v1658
    %v1883 = vpack.c.b16 %v1663, %v1659
    %v1884 = vpack.c.b16 %v1668, %v1664
    %v1885 = vpack.c.b16 %v1669, %v1665
    %v1886 = vpack.c.b16 %v1670, %v1666
    %v1887 = vpack.c.b16 %v1671, %v1667
    %v1888 = vpack.c.b16 %v1676, %v1672
    %v1889 = vpack.c.b16 %v1677, %v1673
    %v1890 = vpack.c.b16 %v1678, %v1674
    %v1891 = vpack.c.b16 %v1679, %v1675
    %v1892 = vpack.c.b16 %v1684, %v1680
    %v1893 = vpack.c.b16 %v1685, %v1681
    %v1894 = vpack.c.b16 %v1686, %v1682
    %v1895 = vpack.c.b16 %v1687, %v1683
    %v1896 = vpack.c.b16 %v1692, %v1688
    %v1897 = vpack.c.b16 %v1693, %v1689
    %v1898 = vpack.c.b16 %v1694, %v1690
    %v1899 = vpack.c.b16 %v1695, %v1691
    %v1900 = vpack.c.b16 %v1700, %v1696
    %v1901 = vpack.c.b16 %v1701, %v1697
    %v1902 = vpack.c.b16 %v1702, %v1698
    %v1903 = vpack.c.b16 %v1703, %v1699
    %v1904 = vpack.c.b16 %v1708, %v1704
    %v1905 = vpack.c.b16 %v1709, %v1705
    %v1906 = vpack.c.b16 %v1710, %v1706
    %v1907 = vpack.c.b16 %v1711, %v1707
    %v1908 = vpack.c.b16 %v1716, %v1712
    %v1909 = vpack.c.b16 %v1717, %v1713
    %v1910 = vpack.c.b16 %v1718, %v1714
    %v1911 = vpack.c.b16 %v1719, %v1715
    %v1912 = vpack.c.b16 %v1724, %v1720
    %v1913 = vpack.c.b16 %v1725, %v1721
    %v1914 = vpack.c.b16 %v1726, %v1722
    %v1915 = vpack.c.b16 %v1727, %v1723
    %v1916 = vpack.c.b16 %v1732, %v1728
    %v1917 = vpack.c.b16 %v1733, %v1729
    %v1918 = vpack.c.b16 %v1734, %v1730
    %v1919 = vpack.c.b16 %v1735, %v1731
    %v1920 = vpack.c.b16 %v1740, %v1736
    %v1921 = vpack.c.b16 %v1741, %v1737
    %v1922 = vpack.c.b16 %v1742, %v1738
    %v1923 = vpack.c.b16 %v1743, %v1739
    %v1924 = vpack.c.b16 %v1748, %v1744
    %v1925 = vpack.c.b16 %v1749, %v1745
    %v1926 = vpack.c.b16 %v1750, %v1746
    %v1927 = vpack.c.b16 %v1751, %v1747
    %v1928 = vpack.c.b16 %v1756, %v1752
    %v1929 = vpack.c.b16 %v1757, %v1753
    %v1930 = vpack.c.b16 %v1758, %v1754
    %v1931 = vpack.c.b16 %v1759, %v1755
    %v1932 = vpack.c.b16 %v1764, %v1760
    %v1933 = vpack.c.b16 %v1765, %v1761
    %v1934 = vpack.c.b16 %v1766, %v1762
    %v1935 = vpack.c.b16 %v1767, %v1763
    %v1936 = vpack.c.b16 %v1772, %v1768
    %v1937 = vpack.c.b16 %v1773, %v1769
    %v1938 = vpack.c.b16 %v1774, %v1770
    %v1939 = vpack.c.b16 %v1775, %v1771
    %v1940 = vpack.c.b16 %v1780, %v1776
    %v1941 = vpack.c.b16 %v1781, %v1777
    %v1942 = vpack.c.b16 %v1782, %v1778
    %v1943 = vpack.c.b16 %v1783, %v1779
    %v1944 = vpack.c.b16 %v1788, %v1784
    %v1945 = vpack.c.b16 %v1789, %v1785
    %v1946 = vpack.c.b16 %v1790, %v1786
    %v1947 = vpack.c.b16 %v1791, %v1787
    %v1948 = vpack.c.b16 %v1796, %v1792
    %v1949 = vpack.c.b16 %v1797, %v1793
    %v1950 = vpack.c.b16 %v1798, %v1794
    %v1951 = vpack.c.b16 %v1799, %v1795
    %v1952 = vpack.c.b16 %v1804, %v1800
    %v1953 = vpack.c.b16 %v1805, %v1801
    %v1954 = vpack.c.b16 %v1806, %v1802
    %v1955 = vpack.c.b16 %v1807, %v1803
    %v1956 = vpack.c.b16 %v1812, %v1808
    %v1957 = vpack.c.b16 %v1813, %v1809
    %v1958 = vpack.c.b16 %v1814, %v1810
    %v1959 = vpack.c.b16 %v1815, %v1811
    %v1960 = vpack.c.b16 %v1820, %v1816
    %v1961 = vpack.c.b16 %v1821, %v1817
    %v1962 = vpack.c.b16 %v1822, %v1818
    %v1963 = vpack.c.b16 %v1823, %v1819
    %v1964 = vpack.c.b16 %v1828, %v1824
    %v1965 = vpack.c.b16 %v1829, %v1825
    %v1966 = vpack.c.b16 %v1830, %v1826
    %v1967 = vpack.c.b16 %v1831, %v1827
    %v1968 = vpack.c.b16 %v1836, %v1832
    %v1969 = vpack.c.b16 %v1837, %v1833
    %v1970 = vpack.c.b16 %v1838, %v1834
    %v1971 = vpack.c.b16 %v1839, %v1835
    %v1972 = vpack.c.b16 %v1844, %v1840
    %v1973 = vpack.c.b16 %v1845, %v1841
    %v1974 = vpack.c.b16 %v1846, %v1842
    %v1975 = vpack.c.b16 %v1847, %v1843
    %2104 = vmatprep.subr.bf16.mxu0 %v1849
    %2105 = vmatpush1.bf16.msra.mxu0 %v1848
    %2106 = vmatprep.subr.bf16.mxu0 %v1853
    %2107 = vmatpush1.bf16.msra.mxu0 %v1852
    %2108 = vmatprep.subr.bf16.mxu0 %v1857
    %2109 = vmatpush1.bf16.msra.mxu0 %v1856
    %2110 = vmatprep.subr.bf16.mxu0 %v1861
    %2111 = vmatpush1.bf16.msra.mxu0 %v1860
    %2112 = vmatprep.subr.bf16.mxu0 %v1865
    %2113 = vmatpush1.bf16.msra.mxu0 %v1864
    %2114 = vmatprep.subr.bf16.mxu0 %v1869
    %2115 = vmatpush1.bf16.msra.mxu0 %v1868
    %2116 = vmatprep.subr.bf16.mxu0 %v1873
    %2117 = vmatpush1.bf16.msra.mxu0 %v1872
    %2118 = vmatprep.subr.bf16.mxu0 %v1877
    %2119 = vmatpush1.bf16.msra.mxu0 %v1876
    %2120 = vmatprep.subr.bf16.mxu0 %v1881
    %2121 = vmatpush1.bf16.msra.mxu0 %v1880
    %2122 = vmatprep.subr.bf16.mxu0 %v1885
    %2123 = vmatpush1.bf16.msra.mxu0 %v1884
    %2124 = vmatprep.subr.bf16.mxu0 %v1889
    %2125 = vmatpush1.bf16.msra.mxu0 %v1888
    %2126 = vmatprep.subr.bf16.mxu0 %v1893
    %2127 = vmatpush1.bf16.msra.mxu0 %v1892
    %2128 = vmatprep.subr.bf16.mxu0 %v1897
    %2129 = vmatpush1.bf16.msra.mxu0 %v1896
    %2130 = vmatprep.subr.bf16.mxu0 %v1901
    %2131 = vmatpush1.bf16.msra.mxu0 %v1900
    %2132 = vmatprep.subr.bf16.mxu0 %v1905
    %2133 = vmatpush1.bf16.msra.mxu0 %v1904
    %2134 = vmatprep.subr.bf16.mxu0 %v1909
    %2135 = vmatpush1.bf16.msra.mxu0 %v1908
    %2136 = vmatprep.mubr.bf16.mxu0 %v1311
    %2137 = vmatmul.mubr.bf16.gmra.mrb[0].mxu0 %v1310
    %v2138 = vpop.f32.mrb[0].mxu0
    %v2139 = vadd.f32 %v1447, %v2138
    %v2140 = vpop.f32.mrb[0].mxu0
    %v2141 = vadd.f32 %v1451, %v2140
    %v2142 = vpop.f32.mrb[0].mxu0
    %v2143 = vpop.f32.mrb[0].mxu0
    %2144 = vdwg.mxu0
    %2145 = vmatprep.subr.bf16.mxu0 %v1913
    %2146 = vmatpush1.bf16.msra.mxu0 %v1912
    %2147 = vmatprep.subr.bf16.mxu0 %v1917
    %2148 = vmatpush1.bf16.msra.mxu0 %v1916
    %2149 = vmatprep.subr.bf16.mxu0 %v1921
    %2150 = vmatpush1.bf16.msra.mxu0 %v1920
    %2151 = vmatprep.subr.bf16.mxu0 %v1925
    %2152 = vmatpush1.bf16.msra.mxu0 %v1924
    %2153 = vmatprep.subr.bf16.mxu0 %v1929
    %2154 = vmatpush1.bf16.msra.mxu0 %v1928
    %2155 = vmatprep.subr.bf16.mxu0 %v1933
    %2156 = vmatpush1.bf16.msra.mxu0 %v1932
    %2157 = vmatprep.subr.bf16.mxu0 %v1937
    %2158 = vmatpush1.bf16.msra.mxu0 %v1936
    %2159 = vmatprep.subr.bf16.mxu0 %v1941
    %2160 = vmatpush1.bf16.msra.mxu0 %v1940
    %2161 = vmatprep.subr.bf16.mxu0 %v1945
    %2162 = vmatpush1.bf16.msra.mxu0 %v1944
    %2163 = vmatprep.subr.bf16.mxu0 %v1949
    %2164 = vmatpush1.bf16.msra.mxu0 %v1948
    %2165 = vmatprep.subr.bf16.mxu0 %v1953
    %2166 = vmatpush1.bf16.msra.mxu0 %v1952
    %2167 = vmatprep.subr.bf16.mxu0 %v1957
    %2168 = vmatpush1.bf16.msra.mxu0 %v1956
    %2169 = vmatprep.subr.bf16.mxu0 %v1961
    %2170 = vmatpush1.bf16.msra.mxu0 %v1960
    %2171 = vmatprep.subr.bf16.mxu0 %v1965
    %2172 = vmatpush1.bf16.msra.mxu0 %v1964
    %2173 = vmatprep.subr.bf16.mxu0 %v1969
    %2174 = vmatpush1.bf16.msra.mxu0 %v1968
    %2175 = vmatprep.subr.bf16.mxu0 %v1973
    %2176 = vmatpush1.bf16.msra.mxu0 %v1972
    %2177 = vmatprep.mubr.bf16.mxu0 %v1313
    %2178 = vmatmul.mubr.bf16.gmra.mrb[0].mxu0 %v1312
    %v2179 = vpop.f32.mrb[0].mxu0
    %v2180 = vadd.f32 %v2139, %v2179
    %v2181 = vpop.f32.mrb[0].mxu0
    %v2182 = vadd.f32 %v2141, %v2181
    %v2183 = vpop.f32.mrb[0].mxu0
    %v2184 = vpop.f32.mrb[0].mxu0
    %2185 = vdwg.mxu0
    %2186 = vmatprep.subr.bf16.mxu0 %v1851
    %2187 = vmatpush1.bf16.msra.mxu0 %v1850
    %2188 = vmatprep.subr.bf16.mxu0 %v1855
    %2189 = vmatpush1.bf16.msra.mxu0 %v1854
    %2190 = vmatprep.subr.bf16.mxu0 %v1859
    %2191 = vmatpush1.bf16.msra.mxu0 %v1858
    %2192 = vmatprep.subr.bf16.mxu0 %v1863
    %2193 = vmatpush1.bf16.msra.mxu0 %v1862
    %2194 = vmatprep.subr.bf16.mxu0 %v1867
    %2195 = vmatpush1.bf16.msra.mxu0 %v1866
    %2196 = vmatprep.subr.bf16.mxu0 %v1871
    %2197 = vmatpush1.bf16.msra.mxu0 %v1870
    %2198 = vmatprep.subr.bf16.mxu0 %v1875
    %2199 = vmatpush1.bf16.msra.mxu0 %v1874
    %2200 = vmatprep.subr.bf16.mxu0 %v1879
    %2201 = vmatpush1.bf16.msra.mxu0 %v1878
    %2202 = vmatprep.subr.bf16.mxu0 %v1883
    %2203 = vmatpush1.bf16.msra.mxu0 %v1882
    %2204 = vmatprep.subr.bf16.mxu0 %v1887
    %2205 = vmatpush1.bf16.msra.mxu0 %v1886
    %2206 = vmatprep.subr.bf16.mxu0 %v1891
    %2207 = vmatpush1.bf16.msra.mxu0 %v1890
    %2208 = vmatprep.subr.bf16.mxu0 %v1895
    %2209 = vmatpush1.bf16.msra.mxu0 %v1894
    %2210 = vmatprep.subr.bf16.mxu0 %v1899
    %2211 = vmatpush1.bf16.msra.mxu0 %v1898
    %2212 = vmatprep.subr.bf16.mxu0 %v1903
    %2213 = vmatpush1.bf16.msra.mxu0 %v1902
    %2214 = vmatprep.subr.bf16.mxu0 %v1907
    %2215 = vmatpush1.bf16.msra.mxu0 %v1906
    %2216 = vmatprep.subr.bf16.mxu0 %v1911
    %2217 = vmatpush1.bf16.msra.mxu0 %v1910
    %2218 = vmatprep.mubr.bf16.mxu0 %v1311
    %2219 = vmatmul.mubr.bf16.gmra.mrb[0].mxu0 %v1310
    %v2220 = vpop.f32.mrb[0].mxu0
    %v2221 = vadd.f32 %v1455, %v2220
    %v2222 = vpop.f32.mrb[0].mxu0
    %v2223 = vadd.f32 %v1459, %v2222
    %v2224 = vpop.f32.mrb[0].mxu0
    %v2225 = vpop.f32.mrb[0].mxu0
    %2226 = vdwg.mxu0
    %2227 = vmatprep.subr.bf16.mxu0 %v1915
    %2228 = vmatpush1.bf16.msra.mxu0 %v1914
    %2229 = vmatprep.subr.bf16.mxu0 %v1919
    %2230 = vmatpush1.bf16.msra.mxu0 %v1918
    %2231 = vmatprep.subr.bf16.mxu0 %v1923
    %2232 = vmatpush1.bf16.msra.mxu0 %v1922
    %2233 = vmatprep.subr.bf16.mxu0 %v1927
    %2234 = vmatpush1.bf16.msra.mxu0 %v1926
    %2235 = vmatprep.subr.bf16.mxu0 %v1931
    %2236 = vmatpush1.bf16.msra.mxu0 %v1930
    %2237 = vmatprep.subr.bf16.mxu0 %v1935
    %2238 = vmatpush1.bf16.msra.mxu0 %v1934
    %2239 = vmatprep.subr.bf16.mxu0 %v1939
    %2240 = vmatpush1.bf16.msra.mxu0 %v1938
    %2241 = vmatprep.subr.bf16.mxu0 %v1943
    %2242 = vmatpush1.bf16.msra.mxu0 %v1942
    %2243 = vmatprep.subr.bf16.mxu0 %v1947
    %2244 = vmatpush1.bf16.msra.mxu0 %v1946
    %2245 = vmatprep.subr.bf16.mxu0 %v1951
    %2246 = vmatpush1.bf16.msra.mxu0 %v1950
    %2247 = vmatprep.subr.bf16.mxu0 %v1955
    %2248 = vmatpush1.bf16.msra.mxu0 %v1954
    %2249 = vmatprep.subr.bf16.mxu0 %v1959
    %2250 = vmatpush1.bf16.msra.mxu0 %v1958
    %2251 = vmatprep.subr.bf16.mxu0 %v1963
    %2252 = vmatpush1.bf16.msra.mxu0 %v1962
    %2253 = vmatprep.subr.bf16.mxu0 %v1967
    %2254 = vmatpush1.bf16.msra.mxu0 %v1966
    %2255 = vmatprep.subr.bf16.mxu0 %v1971
    %2256 = vmatpush1.bf16.msra.mxu0 %v1970
    %2257 = vmatprep.subr.bf16.mxu0 %v1975
    %2258 = vmatpush1.bf16.msra.mxu0 %v1974
    %2259 = vmatprep.mubr.bf16.mxu0 %v1313
    %2260 = vmatmul.mubr.bf16.gmra.mrb[0].mxu0 %v1312
    %v2261 = vpop.f32.mrb[0].mxu0
    %v2262 = vadd.f32 %v2221, %v2261
    %v2263 = vpop.f32.mrb[0].mxu0
    %v2264 = vadd.f32 %v2223, %v2263
    %v2265 = vpop.f32.mrb[0].mxu0
    %v2266 = vpop.f32.mrb[0].mxu0
    %2267 = vdwg.mxu0
    %v2268 = vmax.f32 %v2180, 0.0
    %v2269 = vmax.f32 %v2182, 0.0
    %v2270 = vmax.f32 %v2262, 0.0
    %v2271 = vmax.f32 %v2264, 0.0
    %v2272 = vld [vmem:[%s8] sm:$0xf]
    %v2274 = vlaneseq
    %v2275 = vshrl.u32 %v2274, 7
    %v2276 = vsub.s32 0, %v2275
    %v2277 = vrot.slane %v2272, %v2276
    %v2278 = vlaneseq
    %v2279 = vshrl.u32 %v2278, 7
    %v2280 = vsub.s32 1, %v2279
    %v2281 = vrot.slane %v2272, %v2280
    %v2282 = vlaneseq
    %v2283 = vshrl.u32 %v2282, 7
    %v2284 = vsub.s32 2, %v2283
    %v2285 = vrot.slane %v2272, %v2284
    %v2286 = vlaneseq
    %v2287 = vshrl.u32 %v2286, 7
    %v2288 = vsub.s32 3, %v2287
    %v2289 = vrot.slane %v2272, %v2288
    %v2294 = vmul.f32 %v2268, %v2277
    %v2295 = vmul.f32 %v2269, %v2281
    %v2296 = vmul.f32 %v2270, %v2285
    %v2297 = vmul.f32 %v2271, %v2289
    %v2298 = vadd.f32 %v2294, %v2295
    %v2299 = vadd.f32 %v2298, %v2296
    %v2300 = vadd.f32 %v2299, %v2297
    %2301 = vadd.xlane.f32.xlu0 %v2300
    %v2302 = vpop.xlane.xlu0 %2301
    %v2303 = vld [vmem:[#allocation2] sm:$0x1]
    %v2305 = vlaneseq
    %v2306 = vshrl.u32 %v2305, 7
    %v2307 = vsub.s32 0, %v2306
    %v2308 = vrot.slane %v2303, %v2307
    %v2310 = vadd.f32 %v2302, %v2308
    %vm2311 = vcmask 7168
    %2312 = vst.msk [vmem:[%s10] sm:$0xff] %vm2311, %v2310
    // Predicated region
    $region58: #{tpu_custom_call.1} parent=1 // pred_check
      _
    $region59: #{tpu_custom_call.1} parent=1 // pred_check_branch
      %2314 = sbr.rel (0) target = $region61
    $region60: #{tpu_custom_call.1} parent=1 // pred_region
      _
    $region61: #{tpu_custom_call.1} parent=1 // pred_fallthru
      _
    // Predicated region
    $region62: #{tpu_custom_call.1} parent=1 // pred_check
      _
    $region63: #{tpu_custom_call.1} parent=1 // pred_check_branch
      %2316 = sbr.rel (0) target = $region65
    $region64: #{tpu_custom_call.1} parent=1 // pred_region
      _
    $region65: #{tpu_custom_call.1} parent=1 // pred_fallthru
      _
    %2317 = vsyncpa [#allocation4], 1
    %2318 = vsyncpa [#allocation6], 1
    %2319 = vsyncpa [#allocation9], 1

</llo_original>
